<compile_context>
chip_gen: v7x
topology: tpu7x:2x2x1
jax: 0.10.0
libtpu: 0.0.40
codegen_flags: <defaults>
</compile_context>

<pallas_src>
import jax
import jax.numpy as jnp
from jax.experimental import pallas as pl
from jax.experimental.pallas import tpu as pltpu

BN_EPS = 1e-5  # nn.BatchNorm2d default


# ----------------------------------------------------------------------------
# Fused kernel: one grid step per batch element.
# ----------------------------------------------------------------------------
def _spat_attn_kernel(x_ref, m_ref, u_ref, wv_ref, bv_ref,
                      gamma_ref, bn_g_ref, bn_b_ref,
                      out_ref, sum_sc, ssq_sc):
    b = pl.program_id(0)

    @pl.when(b == 0)
    def _():
        sum_sc[...] = jnp.zeros_like(sum_sc)
        ssq_sc[...] = jnp.zeros_like(ssq_sc)

    xb = x_ref[0]                                            # (C, HW) bf16

    # value projection: (C, C) @ (C, HW), bf16 MXU, f32 accumulate.
    v = jnp.dot(wv_ref[...], xb,
                preferred_element_type=jnp.float32) + bv_ref[...]      # (C, HW)

    # energy[i, j] = x_i^T M x_j + (bq^T Wk x)_j   (bq-row-constant & bq^T bk
    # terms dropped; they cancel in the row softmax).
    mx = jnp.dot(m_ref[...], xb, preferred_element_type=jnp.float32)   # (C, HW)
    c_row = jnp.dot(u_ref[...], xb, preferred_element_type=jnp.float32)  # (1, HW)
    energy = jax.lax.dot_general(
        xb, mx.astype(jnp.bfloat16),
        dimension_numbers=(((0,), (0,)), ((), ())),
        preferred_element_type=jnp.float32)                  # (HW, HW)
    energy = energy + c_row                                  # broadcast over i

    # row softmax over j (torch.nn.Softmax(dim=-1)), f32 throughout.
    mrow = jnp.max(energy, axis=-1, keepdims=True)
    p = jnp.exp(energy - mrow)
    s = jnp.sum(p, axis=-1, keepdims=True)
    att = p * pl.reciprocal(s, approx=True)                  # (HW, HW)

    # out[c, i] = sum_j v[c, j] * att[i, j]   (bf16 MXU, f32 accumulate)
    o = jax.lax.dot_general(
        v.astype(jnp.bfloat16), att.astype(jnp.bfloat16),
        dimension_numbers=(((1,), (1,)), ((), ())),
        preferred_element_type=jnp.float32)                  # (C, HW)

    # gamma * out, then ReLU (first stage of self.bn = Sequential(ReLU, BN)).
    act = jnp.maximum(o * gamma_ref[0, 0], 0.0)

    # Write directly into the resident output block (stays in VMEM across the
    # grid; HBM writeback happens once after the last step).
    out_ref[b] = act

    # Incremental per-channel BN statistics (f32 accumulators).
    sum_sc[...] += jnp.sum(act, axis=-1, keepdims=True)
    ssq_sc[...] += jnp.sum(act * act, axis=-1, keepdims=True)

    # Last step: finalize training-mode BatchNorm2d (biased batch variance
    # over B*H*W) as a single in-place scale/shift pass over the output.
    @pl.when(b == pl.num_programs(0) - 1)
    def _():
        inv_n = 1.0 / (out_ref.shape[0] * out_ref.shape[2])
        mean = sum_sc[...] * inv_n                            # (C, 1)
        var = jnp.maximum(ssq_sc[...] * inv_n - mean * mean, 0.0)
        scale = bn_g_ref[...] * jax.lax.rsqrt(var + BN_EPS)   # (C, 1)
        shift = bn_b_ref[...] - mean * scale
        out_ref[...] = out_ref[...] * scale[None] + shift[None]


def spat_attn_forward(x, params):
    """x: (B, C, H, W) float32 -> (B, C, H, W) float32."""
    B, C, H, W = x.shape
    HW = H * W

    # bf16 MXU operands (f32 accumulation happens inside the kernel).
    xr = x.reshape(B, C, HW).astype(jnp.bfloat16)
    m = (params['wq'].T @ params['wk']).astype(jnp.bfloat16)   # (C, C)  Wq^T Wk
    u = (params['bq'].T @ params['wk']).astype(jnp.bfloat16)   # (1, C)  bq^T Wk
    wv = params['wv'].astype(jnp.bfloat16)                     # (C, C)

    out = pl.pallas_call(
        _spat_attn_kernel,
        out_shape=jax.ShapeDtypeStruct((B, C, HW), jnp.float32),
        grid=(B,),
        in_specs=[
            pl.BlockSpec((1, C, HW), lambda b: (b, 0, 0)),          # x (bf16)
            pl.BlockSpec((C, C), lambda b: (0, 0)),                 # M = Wq^T Wk
            pl.BlockSpec((1, C), lambda b: (0, 0)),                 # u = bq^T Wk
            pl.BlockSpec((C, C), lambda b: (0, 0)),                 # Wv
            pl.BlockSpec((C, 1), lambda b: (0, 0)),                 # bv
            pl.BlockSpec(memory_space=pltpu.MemorySpace.SMEM),      # gamma (1,1)
            pl.BlockSpec((C, 1), lambda b: (0, 0)),                 # bn gamma
            pl.BlockSpec((C, 1), lambda b: (0, 0)),                 # bn beta
        ],
        # Output block = whole array -> resident across the grid; written
        # per-step and normalized in place on the last step.
        out_specs=pl.BlockSpec((B, C, HW), lambda b: (0, 0, 0)),
        scratch_shapes=[pltpu.VMEM((C, 1), jnp.float32),            # sum
                        pltpu.VMEM((C, 1), jnp.float32)],           # sum of sq
        compiler_params=pltpu.CompilerParams(
            dimension_semantics=("arbitrary",),   # BN stats couple batch steps
            vmem_limit_bytes=32 * 1024 * 1024),
    )(xr, m, u, wv, params['bv'], params['gamma'],
      params['bn_g'], params['bn_b'])

    return out.reshape(B, C, H, W)


# ----------------------------------------------------------------------------
# Pure-JAX f32 reference (mirrors the PyTorch forward) for correctness.
# ----------------------------------------------------------------------------
def reference_forward(x, p):
    B, C, H, W = x.shape
    HW = H * W
    xr = x.reshape(B, C, HW).astype(jnp.float32)
    q = jnp.einsum('rc,bcn->brn', p['wq'], xr) + p['bq'][None]
    k = jnp.einsum('rc,bcn->brn', p['wk'], xr) + p['bk'][None]
    v = jnp.einsum('dc,bcn->bdn', p['wv'], xr) + p['bv'][None]
    energy = jnp.einsum('bri,brj->bij', q, k)
    att = jax.nn.softmax(energy, axis=-1)
    o = jnp.einsum('bcj,bij->bci', v, att)
    a = jnp.maximum(p['gamma'][0, 0] * o, 0.0)
    mean = jnp.mean(a, axis=(0, 2), keepdims=True)
    var = jnp.mean((a - mean) ** 2, axis=(0, 2), keepdims=True)
    y = (a - mean) * jax.lax.rsqrt(var + BN_EPS) * p['bn_g'][None] + p['bn_b'][None]
    return y.reshape(B, C, H, W)


# ----------------------------------------------------------------------------
# Deterministic synthetic parameters (shapes per SpatAttn_.__init__; Conv2d
# (Cout, Cin, 1, 1) weights are kept as (Cout, Cin) — the reshape is done
# outside the jitted forward).  Values are chosen so every channel has healthy
# post-ReLU batch variance; this keeps BatchNorm's 1/sigma from amplifying
# bf16 rounding into large output errors in the smoke test.
# ----------------------------------------------------------------------------
def init_params(key, C, ratio=8):
    Cr = C // ratio
    ks = jax.random.split(key, 8)

    def nrm(k, shape, scale):
        return scale * jax.random.normal(k, shape, dtype=jnp.float32)

    return {
        'wq': nrm(ks[0], (Cr, C), 0.15), 'bq': nrm(ks[1], (Cr, 1), 0.1),
        'wk': nrm(ks[2], (Cr, C), 0.15), 'bk': nrm(ks[3], (Cr, 1), 0.1),
        'wv': nrm(ks[4], (C, C), 0.15),
        'bv': 0.3 + nrm(ks[5], (C, 1), 0.1),
        # PyTorch initializes gamma to 0 (output would trivially be BN(relu(0)));
        # a nonzero gamma exercises the full attention path. Semantics identical.
        'gamma': jnp.full((1, 1), 0.7, dtype=jnp.float32),
        'bn_g': 1.0 + nrm(ks[6], (C, 1), 0.1),
        'bn_b': nrm(ks[7], (C, 1), 0.1),
    }


if __name__ == "__main__":
    B, C, H, W = 2, 32, 16, 16    # in_dim=32, ratio=8 -> Cr=4, HW=256 (lane dense)
    key = jax.random.PRNGKey(0)
    kx, kp = jax.random.split(key)
    x = jax.random.normal(kx, (B, C, H, W), dtype=jnp.float32)
    params = init_params(kp, C, ratio=8)

    fwd = jax.jit(spat_attn_forward)
    out = fwd(x, params)
    jax.block_until_ready(out)
    assert out.shape == (B, C, H, W)
    assert bool(jnp.all(jnp.isfinite(out)))

    ref = reference_forward(x, params)
    err = float(jnp.max(jnp.abs(out - ref)))
    # Tolerance: bf16 MXU operands (per perf review) plus training-mode
    # BatchNorm's 1/sigma normalization amplify rounding to ~1e-2 at these
    # toy scales; bound set with margin.  Reference is full f32.
    assert err < 1e-1, f"max abs err {err}"
    print("KERNEL_OK")
</pallas_src>

<mosaic_0001>
module attributes {stable_mosaic.version = 11 : i64} {
  func.func @_spat_attn_kernel(%arg0: i32, %arg1: memref<1x32x256xbf16, #tpu.memory_space<vmem>>, %arg2: memref<32x32xbf16, #tpu.memory_space<vmem>>, %arg3: memref<1x32xbf16, #tpu.memory_space<vmem>>, %arg4: memref<32x32xbf16, #tpu.memory_space<vmem>>, %arg5: memref<32x1xf32, #tpu.memory_space<vmem>>, %arg6: memref<1x1xf32, #tpu.memory_space<smem>>, %arg7: memref<32x1xf32, #tpu.memory_space<vmem>>, %arg8: memref<32x1xf32, #tpu.memory_space<vmem>>, %arg9: memref<2x32x256xf32, #tpu.memory_space<vmem>>, %arg10: memref<32x1xf32, #tpu.memory_space<vmem>>, %arg11: memref<32x1xf32, #tpu.memory_space<vmem>>) attributes {dimension_semantics = [#tpu.dimension_semantics<arbitrary>], iteration_bounds = array<i64: 2>, scalar_prefetch = 0 : i64, scratch_operands = 2 : i64, tpu.core_type = #tpu.core_type<tc>, window_params = [{transform_indices = @transform_0, window_bounds = array<i64: 1, 32, 256>}, {pipeline_mode = #tpu.pipeline_mode<synchronous>, transform_indices = @transform_1, window_bounds = array<i64: 32, 32>}, {pipeline_mode = #tpu.pipeline_mode<synchronous>, transform_indices = @transform_2, window_bounds = array<i64: 1, 32>}, {pipeline_mode = #tpu.pipeline_mode<synchronous>, transform_indices = @transform_3, window_bounds = array<i64: 32, 32>}, {pipeline_mode = #tpu.pipeline_mode<synchronous>, transform_indices = @transform_4, window_bounds = array<i64: 32, 1>}, {transform_indices = @transform_5, window_bounds = array<i64: 1, 1>}, {pipeline_mode = #tpu.pipeline_mode<synchronous>, transform_indices = @transform_6, window_bounds = array<i64: 32, 1>}, {pipeline_mode = #tpu.pipeline_mode<synchronous>, transform_indices = @transform_7, window_bounds = array<i64: 32, 1>}, {pipeline_mode = #tpu.pipeline_mode<synchronous>, transform_indices = @transform_8, window_bounds = array<i64: 2, 32, 256>}]} {
    %c0_i32 = arith.constant 0 : i32
    %0 = arith.cmpi eq, %arg0, %c0_i32 : i32
    %1 = arith.extui %0 : i1 to i32
    %c0_i32_0 = arith.constant 0 : i32
    %2 = arith.cmpi ne, %1, %c0_i32_0 : i32
    scf.if %2 {
      %cst_33 = arith.constant 0.000000e+00 : f32
      %54 = vector.broadcast %cst_33 : f32 to vector<32x1xf32>
      %c0_34 = arith.constant 0 : index
      %c0_35 = arith.constant 0 : index
      %55 = vector.load %arg10[%c0_34, %c0_35] : memref<32x1xf32, #tpu.memory_space<vmem>>, vector<32x1xf32>
      tpu.vector_store %arg10[%c0_34, %c0_35], %54 {strides = array<i32>} : memref<32x1xf32, #tpu.memory_space<vmem>>, vector<32x1xf32>,
      %cst_36 = arith.constant 0.000000e+00 : f32
      %56 = vector.broadcast %cst_36 : f32 to vector<32x1xf32>
      %c0_37 = arith.constant 0 : index
      %c0_38 = arith.constant 0 : index
      %57 = vector.load %arg11[%c0_37, %c0_38] : memref<32x1xf32, #tpu.memory_space<vmem>>, vector<32x1xf32>
      tpu.vector_store %arg11[%c0_37, %c0_38], %56 {strides = array<i32>} : memref<32x1xf32, #tpu.memory_space<vmem>>, vector<32x1xf32>,
    } else {
    }
    %c0 = arith.constant 0 : index
    %c0_1 = arith.constant 0 : index
    %c0_2 = arith.constant 0 : index
    %3 = vector.load %arg1[%c0, %c0_1, %c0_2] : memref<1x32x256xbf16, #tpu.memory_space<vmem>>, vector<1x32x256xbf16>
    %4 = vector.shape_cast %3 : vector<1x32x256xbf16> to vector<32x256xbf16>
    %c0_3 = arith.constant 0 : index
    %c0_4 = arith.constant 0 : index
    %5 = vector.load %arg4[%c0_3, %c0_4] : memref<32x32xbf16, #tpu.memory_space<vmem>>, vector<32x32xbf16>
    %cst = arith.constant dense<0.000000e+00> : vector<32x256xf32>
    %6 = tpu.matmul %5, %4, %cst {dimension_numbers = #tpu.dot_dimension_numbers<[1], [0], [0], [1], [0, 0, 1, 1], [], []>} : vector<32x32xbf16>, vector<32x256xbf16>, vector<32x256xf32> -> vector<32x256xf32>
    %c0_5 = arith.constant 0 : index
    %c0_6 = arith.constant 0 : index
    %7 = vector.load %arg5[%c0_5, %c0_6] : memref<32x1xf32, #tpu.memory_space<vmem>>, vector<32x1xf32>
    %8 = vector.broadcast %7 : vector<32x1xf32> to vector<32x256xf32>
    %9 = arith.addf %6, %8 : vector<32x256xf32>
    %c0_7 = arith.constant 0 : index
    %c0_8 = arith.constant 0 : index
    %10 = vector.load %arg2[%c0_7, %c0_8] : memref<32x32xbf16, #tpu.memory_space<vmem>>, vector<32x32xbf16>
    %cst_9 = arith.constant dense<0.000000e+00> : vector<32x256xf32>
    %11 = tpu.matmul %10, %4, %cst_9 {dimension_numbers = #tpu.dot_dimension_numbers<[1], [0], [0], [1], [0, 0, 1, 1], [], []>} : vector<32x32xbf16>, vector<32x256xbf16>, vector<32x256xf32> -> vector<32x256xf32>
    %c0_10 = arith.constant 0 : index
    %c0_11 = arith.constant 0 : index
    %12 = vector.load %arg3[%c0_10, %c0_11] : memref<1x32xbf16, #tpu.memory_space<vmem>>, vector<1x32xbf16>
    %cst_12 = arith.constant dense<0.000000e+00> : vector<1x256xf32>
    %13 = tpu.matmul %12, %4, %cst_12 {dimension_numbers = #tpu.dot_dimension_numbers<[1], [0], [0], [1], [0, 0, 1, 1], [], []>} : vector<1x32xbf16>, vector<32x256xbf16>, vector<1x256xf32> -> vector<1x256xf32>
    %14 = arith.truncf %11 : vector<32x256xf32> to vector<32x256xbf16>
    %cst_13 = arith.constant dense<0.000000e+00> : vector<256x256xf32>
    %15 = tpu.matmul %4, %14, %cst_13 {dimension_numbers = #tpu.dot_dimension_numbers<[0], [0], [1], [1], [0, 1, 1, 1], [], []>} : vector<32x256xbf16>, vector<32x256xbf16>, vector<256x256xf32> -> vector<256x256xf32>
    %16 = vector.broadcast %13 : vector<1x256xf32> to vector<256x256xf32>
    %17 = arith.addf %15, %16 : vector<256x256xf32>
    %cst_14 = arith.constant dense<0xFF800000> : vector<256xf32>
    %18 = vector.multi_reduction <maximumf>, %17, %cst_14 [1] : vector<256x256xf32> to vector<256xf32>
    %19 = vector.shape_cast %18 : vector<256xf32> to vector<256x1xf32>
    %20 = vector.broadcast %19 : vector<256x1xf32> to vector<256x256xf32>
    %21 = arith.subf %17, %20 : vector<256x256xf32>
    %22 = math.exp %21 : vector<256x256xf32>
    %cst_15 = arith.constant dense<0.000000e+00> : vector<256xf32>
    %23 = vector.multi_reduction <add>, %22, %cst_15 [1] : vector<256x256xf32> to vector<256xf32>
    %24 = vector.shape_cast %23 : vector<256xf32> to vector<256x1xf32>
    %25 = tpu.reciprocal %24 {approx = true} : vector<256x1xf32> -> vector<256x1xf32>
    %26 = vector.broadcast %25 : vector<256x1xf32> to vector<256x256xf32>
    %27 = arith.mulf %22, %26 : vector<256x256xf32>
    %28 = arith.truncf %9 : vector<32x256xf32> to vector<32x256xbf16>
    %29 = arith.truncf %27 : vector<256x256xf32> to vector<256x256xbf16>
    %cst_16 = arith.constant dense<0.000000e+00> : vector<32x256xf32>
    %30 = tpu.matmul %28, %29, %cst_16 {dimension_numbers = #tpu.dot_dimension_numbers<[1], [1], [0], [0], [0, 0, 1, 0], [], []>} : vector<32x256xbf16>, vector<256x256xbf16>, vector<32x256xf32> -> vector<32x256xf32>
    %c0_17 = arith.constant 0 : index
    %c0_18 = arith.constant 0 : index
    %31 = memref.load %arg6[%c0_17, %c0_18] : memref<1x1xf32, #tpu.memory_space<smem>>
    %32 = vector.broadcast %31 : f32 to vector<32x256xf32>
    %33 = arith.mulf %30, %32 : vector<32x256xf32>
    %cst_19 = arith.constant 0.000000e+00 : f32
    %34 = vector.broadcast %cst_19 : f32 to vector<32x256xf32>
    %35 = arith.maximumf %33, %34 : vector<32x256xf32>
    %36 = arith.index_cast %arg0 : i32 to index
    %c0_20 = arith.constant 0 : index
    %c0_21 = arith.constant 0 : index
    %37 = vector.load %arg9[%36, %c0_20, %c0_21] : memref<2x32x256xf32, #tpu.memory_space<vmem>>, vector<1x32x256xf32>
    %38 = vector.shape_cast %37 : vector<1x32x256xf32> to vector<32x256xf32>
    %39 = vector.shape_cast %35 : vector<32x256xf32> to vector<1x32x256xf32>
    tpu.vector_store %arg9[%36, %c0_20, %c0_21], %39 {strides = array<i32>} : memref<2x32x256xf32, #tpu.memory_space<vmem>>, vector<1x32x256xf32>,
    %c0_22 = arith.constant 0 : index
    %c0_23 = arith.constant 0 : index
    %40 = vector.load %arg10[%c0_22, %c0_23] : memref<32x1xf32, #tpu.memory_space<vmem>>, vector<32x1xf32>
    %cst_24 = arith.constant dense<0.000000e+00> : vector<32xf32>
    %41 = vector.multi_reduction <add>, %35, %cst_24 [1] : vector<32x256xf32> to vector<32xf32>
    %42 = vector.shape_cast %41 : vector<32xf32> to vector<32x1xf32>
    %43 = arith.addf %40, %42 : vector<32x1xf32>
    %c0_25 = arith.constant 0 : index
    %c0_26 = arith.constant 0 : index
    %44 = vector.load %arg10[%c0_25, %c0_26] : memref<32x1xf32, #tpu.memory_space<vmem>>, vector<32x1xf32>
    tpu.vector_store %arg10[%c0_25, %c0_26], %43 {strides = array<i32>} : memref<32x1xf32, #tpu.memory_space<vmem>>, vector<32x1xf32>,
    %c0_27 = arith.constant 0 : index
    %c0_28 = arith.constant 0 : index
    %45 = vector.load %arg11[%c0_27, %c0_28] : memref<32x1xf32, #tpu.memory_space<vmem>>, vector<32x1xf32>
    %46 = arith.mulf %35, %35 : vector<32x256xf32>
    %cst_29 = arith.constant dense<0.000000e+00> : vector<32xf32>
    %47 = vector.multi_reduction <add>, %46, %cst_29 [1] : vector<32x256xf32> to vector<32xf32>
    %48 = vector.shape_cast %47 : vector<32xf32> to vector<32x1xf32>
    %49 = arith.addf %45, %48 : vector<32x1xf32>
    %c0_30 = arith.constant 0 : index
    %c0_31 = arith.constant 0 : index
    %50 = vector.load %arg11[%c0_30, %c0_31] : memref<32x1xf32, #tpu.memory_space<vmem>>, vector<32x1xf32>
    tpu.vector_store %arg11[%c0_30, %c0_31], %49 {strides = array<i32>} : memref<32x1xf32, #tpu.memory_space<vmem>>, vector<32x1xf32>,
    %c1_i32 = arith.constant 1 : i32
    %51 = arith.cmpi eq, %arg0, %c1_i32 : i32
    %52 = arith.extui %51 : i1 to i32
    %c0_i32_32 = arith.constant 0 : i32
    %53 = arith.cmpi ne, %52, %c0_i32_32 : i32
    scf.if %53 {
      %c0_33 = arith.constant 0 : index
      %c0_34 = arith.constant 0 : index
      %54 = vector.load %arg10[%c0_33, %c0_34] : memref<32x1xf32, #tpu.memory_space<vmem>>, vector<32x1xf32>
      %cst_35 = arith.constant 0.001953125 : f32
      %55 = vector.broadcast %cst_35 : f32 to vector<32x1xf32>
      %56 = arith.mulf %54, %55 : vector<32x1xf32>
      %c0_36 = arith.constant 0 : index
      %c0_37 = arith.constant 0 : index
      %57 = vector.load %arg11[%c0_36, %c0_37] : memref<32x1xf32, #tpu.memory_space<vmem>>, vector<32x1xf32>
      %cst_38 = arith.constant 0.001953125 : f32
      %58 = vector.broadcast %cst_38 : f32 to vector<32x1xf32>
      %59 = arith.mulf %57, %58 : vector<32x1xf32>
      %60 = arith.mulf %56, %56 : vector<32x1xf32>
      %61 = arith.subf %59, %60 : vector<32x1xf32>
      %cst_39 = arith.constant 0.000000e+00 : f32
      %62 = vector.broadcast %cst_39 : f32 to vector<32x1xf32>
      %63 = arith.maximumf %61, %62 : vector<32x1xf32>
      %c0_40 = arith.constant 0 : index
      %c0_41 = arith.constant 0 : index
      %64 = vector.load %arg7[%c0_40, %c0_41] : memref<32x1xf32, #tpu.memory_space<vmem>>, vector<32x1xf32>
      %cst_42 = arith.constant 9.99999974E-6 : f32
      %65 = vector.broadcast %cst_42 : f32 to vector<32x1xf32>
      %66 = arith.addf %63, %65 : vector<32x1xf32>
      %67 = math.rsqrt %66 : vector<32x1xf32>
      %68 = arith.mulf %64, %67 : vector<32x1xf32>
      %c0_43 = arith.constant 0 : index
      %c0_44 = arith.constant 0 : index
      %69 = vector.load %arg8[%c0_43, %c0_44] : memref<32x1xf32, #tpu.memory_space<vmem>>, vector<32x1xf32>
      %70 = arith.mulf %56, %68 : vector<32x1xf32>
      %71 = arith.subf %69, %70 : vector<32x1xf32>
      %c0_45 = arith.constant 0 : index
      %c0_46 = arith.constant 0 : index
      %c0_47 = arith.constant 0 : index
      %72 = vector.load %arg9[%c0_45, %c0_46, %c0_47] : memref<2x32x256xf32, #tpu.memory_space<vmem>>, vector<2x32x256xf32>
      %73 = vector.shape_cast %68 : vector<32x1xf32> to vector<1x32x1xf32>
      %74 = vector.broadcast %73 : vector<1x32x1xf32> to vector<2x32x256xf32>
      %75 = arith.mulf %72, %74 : vector<2x32x256xf32>
      %76 = vector.shape_cast %71 : vector<32x1xf32> to vector<1x32x1xf32>
      %77 = vector.broadcast %76 : vector<1x32x1xf32> to vector<2x32x256xf32>
      %78 = arith.addf %75, %77 : vector<2x32x256xf32>
      %c0_48 = arith.constant 0 : index
      %c0_49 = arith.constant 0 : index
      %c0_50 = arith.constant 0 : index
      %79 = vector.load %arg9[%c0_48, %c0_49, %c0_50] : memref<2x32x256xf32, #tpu.memory_space<vmem>>, vector<2x32x256xf32>
      tpu.vector_store %arg9[%c0_48, %c0_49, %c0_50], %78 {strides = array<i32>} : memref<2x32x256xf32, #tpu.memory_space<vmem>>, vector<2x32x256xf32>,
    } else {
    }
    return
  }
  func.func @transform_0(%arg0: i32) -> (i32, i32, i32) {
    %c0_i32 = arith.constant 0 : i32
    %c0_i32_0 = arith.constant 0 : i32
    %c0_i32_1 = arith.constant 0 : i32
    return %arg0, %c0_i32, %c0_i32_0 : i32, i32, i32
  }
  func.func @transform_1(%arg0: i32) -> (i32, i32) {
    %c0_i32 = arith.constant 0 : i32
    %c0_i32_0 = arith.constant 0 : i32
    %c0_i32_1 = arith.constant 0 : i32
    return %c0_i32, %c0_i32_0 : i32, i32
  }
  func.func @transform_2(%arg0: i32) -> (i32, i32) {
    %c0_i32 = arith.constant 0 : i32
    %c0_i32_0 = arith.constant 0 : i32
    %c0_i32_1 = arith.constant 0 : i32
    return %c0_i32, %c0_i32_0 : i32, i32
  }
  func.func @transform_3(%arg0: i32) -> (i32, i32) {
    %c0_i32 = arith.constant 0 : i32
    %c0_i32_0 = arith.constant 0 : i32
    %c0_i32_1 = arith.constant 0 : i32
    return %c0_i32, %c0_i32_0 : i32, i32
  }
  func.func @transform_4(%arg0: i32) -> (i32, i32) {
    %c0_i32 = arith.constant 0 : i32
    %c0_i32_0 = arith.constant 0 : i32
    %c0_i32_1 = arith.constant 0 : i32
    return %c0_i32, %c0_i32_0 : i32, i32
  }
  func.func @transform_5(%arg0: i32) -> (i32, i32) {
    %c0_i32 = arith.constant 0 : i32
    %c0_i32_0 = arith.constant 0 : i32
    %c0_i32_1 = arith.constant 0 : i32
    return %c0_i32, %c0_i32_0 : i32, i32
  }
  func.func @transform_6(%arg0: i32) -> (i32, i32) {
    %c0_i32 = arith.constant 0 : i32
    %c0_i32_0 = arith.constant 0 : i32
    %c0_i32_1 = arith.constant 0 : i32
    return %c0_i32, %c0_i32_0 : i32, i32
  }
  func.func @transform_7(%arg0: i32) -> (i32, i32) {
    %c0_i32 = arith.constant 0 : i32
    %c0_i32_0 = arith.constant 0 : i32
    %c0_i32_1 = arith.constant 0 : i32
    return %c0_i32, %c0_i32_0 : i32, i32
  }
  func.func @transform_8(%arg0: i32) -> (i32, i32, i32) {
    %c0_i32 = arith.constant 0 : i32
    %c0_i32_0 = arith.constant 0 : i32
    %c0_i32_1 = arith.constant 0 : i32
    %c0_i32_2 = arith.constant 0 : i32
    return %c0_i32, %c0_i32_0, %c0_i32_1 : i32, i32, i32
  }
}

</mosaic_0001>

<llo_original>
// kernel: spat_attn_forward.1
$region0: #{spat_attn_forward.1}
  #allocation0 [shape = 'u32[]', space=smem, size = 0x4, offset = 0x4, fixed_abs, tag = 'smem constant byte address 0x4 - core index']
  #allocation1 [shape = 'u32[144,128]{1,0:T(1,128)}', space=vmem, size = 0x12000, scoped, tag = 'internal scratch']
  #allocation2 [shape = 'f32[32,1]{1,0:T(8,128)}', space=vmem, size = 0x4000, scoped, tag = 'scratch operand']
  #allocation3 [shape = 'f32[32,1]{1,0:T(8,128)}', space=vmem, size = 0x4000, scoped, tag = 'scratch operand']
  #allocation4 [shape = 'f32[1,1]{1,0:T(1,128)S(6)}', space=smem, size = 0x200, scoped, tag = 'scoped memory for spat_attn_forward.1']
  %s0 = inlined_call_operand.vmem [shape: bf16[2,32,256], index: 0, kind: input, shape index: {}]
  %s1 = inlined_call_operand.vmem [shape: bf16[32,32], index: 1, kind: input, shape index: {}]
  %s2 = inlined_call_operand.vmem [shape: bf16[1,32], index: 2, kind: input, shape index: {}]
  %s3 = inlined_call_operand.vmem [shape: bf16[32,32], index: 3, kind: input, shape index: {}]
  %s4 = inlined_call_operand.vmem [shape: f32[32,1], index: 4, kind: input, shape index: {}]
  %s5 = inlined_call_operand.<no memory space> [shape: f32[1,1], index: 5, kind: input, shape index: {}]
  %s6 = inlined_call_operand.vmem [shape: f32[32,1], index: 6, kind: input, shape index: {}]
  %s7 = inlined_call_operand.vmem [shape: f32[32,1], index: 7, kind: input, shape index: {}]
  %s8 = inlined_call_operand.vmem [shape: f32[2,32,256], index: 8, kind: output, shape index: {}]
  %s9 = sld [smem:[#allocation0]]
  $region73: #{spat_attn_forward.1} parent=0
    _
  %s11 = ssub.s32 1, %s9
  %s12 = scalar_select 0, %s11, %s9
  %13 = sst [smem:[#allocation4]] %s5
  loop: start=0, step=1, limit=4
  $region2: #{spat_attn_forward.1} parent=0 // loop_pre_header
    _
  $region3: #{spat_attn_forward.1} parent=0 // loop_header
    %s15 = sphi 0, %s19
    %p16 = scmp.ge.s32.totalorder %s15, 4
    %s25 = sphi 0, %s27
    %s28 = sphi 0, %s25
    %s29 = sphi 0, %s28
    %s45 = sphi 0, %s29
    %s49 = sphi 0, %s49
    %s51 = sphi 0, %s49
    %s52 = sphi 0, %s51
    %s66 = sphi 0, %s52
    %s70 = sphi 0, %s70
    %s72 = sphi 0, %s70
    %s73 = sphi 0, %s72
    %s87 = sphi 0, %s73
    %s91 = sphi 0, %s91
    %s93 = sphi 0, %s91
    %s94 = sphi 0, %s93
    %s108 = sphi 0, %s94
    %s112 = sphi 0, %s112
    %s114 = sphi 0, %s112
    %s115 = sphi 0, %s114
    %s129 = sphi 0, %s115
    %s133 = sphi 0, %s133
    %s135 = sphi 0, %s133
    %s136 = sphi 0, %s135
    %s150 = sphi 0, %s136
    %s154 = sphi 0, %s154
    %s156 = sphi 0, %s154
    %s157 = sphi 0, %s156
    %s171 = sphi 0, %s157
    %s175 = sphi 0, %s175
    %s177 = sphi 0, %s175
    %s178 = sphi 0, %s177
    %s192 = sphi 0, %s178
    %s196 = sphi 0, %s196
    %s198 = sphi 0, %s196
    %s199 = sphi 0, %s198
    %s213 = sphi 0, %s199
  $region4: #{spat_attn_forward.1} parent=0 // loop_header_branch
    %18 = sbr.rel (%p16) target = $region8
  $region5: #{spat_attn_forward.1} parent=0 // loop_body
    %s20 = ssub.s32 %s15, 1
    %s21 = ssub.s32 %s15, 2
    %s22 = sadd.s32 %s15, 1
    %s23 = ssub.s32 %s15, %s22
    %p24 = scmp.eq.s32.totalorder %s23, 0
    %s26 = sadd.s32 %s25, 1
    %s27 = scalar_select %p24, %s25, %s26
    %p30 = pneg %p24
    %p31 = scmp.eq.s32.totalorder %s15, 1
    %p32 = por %p30, %p31
    %p33 = scmp.ne.s32.totalorder %s25, %s28
    %p34 = scmp.eq.s32.totalorder %s15, 0
    %p35 = por %p33, %p34
    %p36 = scmp.ne.s32.totalorder %s25, %s28
    %p37 = scmp.eq.s32.totalorder %s20, 1
    %p38 = por %p36, %p37
    %p39 = scmp.ne.s32.totalorder %s28, %s29
    %p40 = scmp.eq.s32.totalorder %s20, 0
    %p41 = por %p39, %p40
    %p42 = scmp.ne.s32.totalorder %s28, %s29
    %p43 = scmp.eq.s32.totalorder %s21, 1
    %p44 = por %p42, %p43
    %p46 = scmp.ne.s32.totalorder %s29, %s45
    %p47 = scmp.eq.s32.totalorder %s21, 0
    %p48 = por %p46, %p47
    %s50 = sadd.s32 %s49, 1
    %p53 = scmp.eq.s32.totalorder %s15, 1
    %p54 = scmp.ne.s32.totalorder %s49, %s51
    %p55 = scmp.eq.s32.totalorder %s15, 0
    %p56 = por %p54, %p55
    %p57 = scmp.ne.s32.totalorder %s49, %s51
    %p58 = scmp.eq.s32.totalorder %s20, 1
    %p59 = por %p57, %p58
    %p60 = scmp.ne.s32.totalorder %s51, %s52
    %p61 = scmp.eq.s32.totalorder %s20, 0
    %p62 = por %p60, %p61
    %p63 = scmp.ne.s32.totalorder %s51, %s52
    %p64 = scmp.eq.s32.totalorder %s21, 1
    %p65 = por %p63, %p64
    %p67 = scmp.ne.s32.totalorder %s52, %s66
    %p68 = scmp.eq.s32.totalorder %s21, 0
    %p69 = por %p67, %p68
    %s71 = sadd.s32 %s70, 1
    %p74 = scmp.eq.s32.totalorder %s15, 1
    %p75 = scmp.ne.s32.totalorder %s70, %s72
    %p76 = scmp.eq.s32.totalorder %s15, 0
    %p77 = por %p75, %p76
    %p78 = scmp.ne.s32.totalorder %s70, %s72
    %p79 = scmp.eq.s32.totalorder %s20, 1
    %p80 = por %p78, %p79
    %p81 = scmp.ne.s32.totalorder %s72, %s73
    %p82 = scmp.eq.s32.totalorder %s20, 0
    %p83 = por %p81, %p82
    %p84 = scmp.ne.s32.totalorder %s72, %s73
    %p85 = scmp.eq.s32.totalorder %s21, 1
    %p86 = por %p84, %p85
    %p88 = scmp.ne.s32.totalorder %s73, %s87
    %p89 = scmp.eq.s32.totalorder %s21, 0
    %p90 = por %p88, %p89
    %s92 = sadd.s32 %s91, 1
    %p95 = scmp.eq.s32.totalorder %s15, 1
    %p96 = scmp.ne.s32.totalorder %s91, %s93
    %p97 = scmp.eq.s32.totalorder %s15, 0
    %p98 = por %p96, %p97
    %p99 = scmp.ne.s32.totalorder %s91, %s93
    %p100 = scmp.eq.s32.totalorder %s20, 1
    %p101 = por %p99, %p100
    %p102 = scmp.ne.s32.totalorder %s93, %s94
    %p103 = scmp.eq.s32.totalorder %s20, 0
    %p104 = por %p102, %p103
    %p105 = scmp.ne.s32.totalorder %s93, %s94
    %p106 = scmp.eq.s32.totalorder %s21, 1
    %p107 = por %p105, %p106
    %p109 = scmp.ne.s32.totalorder %s94, %s108
    %p110 = scmp.eq.s32.totalorder %s21, 0
    %p111 = por %p109, %p110
    %s113 = sadd.s32 %s112, 1
    %p116 = scmp.eq.s32.totalorder %s15, 1
    %p117 = scmp.ne.s32.totalorder %s112, %s114
    %p118 = scmp.eq.s32.totalorder %s15, 0
    %p119 = por %p117, %p118
    %p120 = scmp.ne.s32.totalorder %s112, %s114
    %p121 = scmp.eq.s32.totalorder %s20, 1
    %p122 = por %p120, %p121
    %p123 = scmp.ne.s32.totalorder %s114, %s115
    %p124 = scmp.eq.s32.totalorder %s20, 0
    %p125 = por %p123, %p124
    %p126 = scmp.ne.s32.totalorder %s114, %s115
    %p127 = scmp.eq.s32.totalorder %s21, 1
    %p128 = por %p126, %p127
    %p130 = scmp.ne.s32.totalorder %s115, %s129
    %p131 = scmp.eq.s32.totalorder %s21, 0
    %p132 = por %p130, %p131
    %s134 = sadd.s32 %s133, 1
    %p137 = scmp.eq.s32.totalorder %s15, 1
    %p138 = scmp.ne.s32.totalorder %s133, %s135
    %p139 = scmp.eq.s32.totalorder %s15, 0
    %p140 = por %p138, %p139
    %p141 = scmp.ne.s32.totalorder %s133, %s135
    %p142 = scmp.eq.s32.totalorder %s20, 1
    %p143 = por %p141, %p142
    %p144 = scmp.ne.s32.totalorder %s135, %s136
    %p145 = scmp.eq.s32.totalorder %s20, 0
    %p146 = por %p144, %p145
    %p147 = scmp.ne.s32.totalorder %s135, %s136
    %p148 = scmp.eq.s32.totalorder %s21, 1
    %p149 = por %p147, %p148
    %p151 = scmp.ne.s32.totalorder %s136, %s150
    %p152 = scmp.eq.s32.totalorder %s21, 0
    %p153 = por %p151, %p152
    %s155 = sadd.s32 %s154, 1
    %p158 = scmp.eq.s32.totalorder %s15, 1
    %p159 = scmp.ne.s32.totalorder %s154, %s156
    %p160 = scmp.eq.s32.totalorder %s15, 0
    %p161 = por %p159, %p160
    %p162 = scmp.ne.s32.totalorder %s154, %s156
    %p163 = scmp.eq.s32.totalorder %s20, 1
    %p164 = por %p162, %p163
    %p165 = scmp.ne.s32.totalorder %s156, %s157
    %p166 = scmp.eq.s32.totalorder %s20, 0
    %p167 = por %p165, %p166
    %p168 = scmp.ne.s32.totalorder %s156, %s157
    %p169 = scmp.eq.s32.totalorder %s21, 1
    %p170 = por %p168, %p169
    %p172 = scmp.ne.s32.totalorder %s157, %s171
    %p173 = scmp.eq.s32.totalorder %s21, 0
    %p174 = por %p172, %p173
    %s176 = sadd.s32 %s175, 1
    %p179 = scmp.eq.s32.totalorder %s15, 1
    %p180 = scmp.ne.s32.totalorder %s175, %s177
    %p181 = scmp.eq.s32.totalorder %s15, 0
    %p182 = por %p180, %p181
    %p183 = scmp.ne.s32.totalorder %s175, %s177
    %p184 = scmp.eq.s32.totalorder %s20, 1
    %p185 = por %p183, %p184
    %p186 = scmp.ne.s32.totalorder %s177, %s178
    %p187 = scmp.eq.s32.totalorder %s20, 0
    %p188 = por %p186, %p187
    %p189 = scmp.ne.s32.totalorder %s177, %s178
    %p190 = scmp.eq.s32.totalorder %s21, 1
    %p191 = por %p189, %p190
    %p193 = scmp.ne.s32.totalorder %s178, %s192
    %p194 = scmp.eq.s32.totalorder %s21, 0
    %p195 = por %p193, %p194
    %s197 = sadd.s32 %s196, 1
    %p200 = scmp.eq.s32.totalorder %s15, 1
    %p201 = scmp.ne.s32.totalorder %s196, %s198
    %p202 = scmp.eq.s32.totalorder %s15, 0
    %p203 = por %p201, %p202
    %p204 = scmp.ne.s32.totalorder %s196, %s198
    %p205 = scmp.eq.s32.totalorder %s20, 1
    %p206 = por %p204, %p205
    %p207 = scmp.ne.s32.totalorder %s198, %s199
    %p208 = scmp.eq.s32.totalorder %s20, 0
    %p209 = por %p207, %p208
    %p210 = scmp.ne.s32.totalorder %s198, %s199
    %p211 = scmp.eq.s32.totalorder %s21, 1
    %p212 = por %p210, %p211
    %p214 = scmp.ne.s32.totalorder %s199, %s213
    %p215 = scmp.eq.s32.totalorder %s21, 0
    %p216 = por %p214, %p215
    %p217 = scmp.le.s32.totalorder 1, %s15
    %p218 = scmp.lt.s32.totalorder %s15, 3
    %p219 = pnand %p217, %p218
    %p220 = pneg %p219
    // Predicated region
    $region9: #{spat_attn_forward.1} parent=5 // pred_check
      _
    $region10: #{spat_attn_forward.1} parent=5 // pred_check_branch
      %222 = sbr.rel (%p219) target = $region12
    $region11: #{spat_attn_forward.1} parent=5 // pred_region
      %s223 = ssub.s32 %s15, 1
      // Predicated region
      $region13: #{spat_attn_forward.1} parent=11 // pred_check
        %p224 = pneg %p62
      $region14: #{spat_attn_forward.1} parent=11 // pred_check_branch
        %226 = sbr.rel (%p224) target = $region16
      $region15: #{spat_attn_forward.1} parent=11 // pred_region
        _
      $region16: #{spat_attn_forward.1} parent=11 // pred_fallthru
        _
      // Predicated region
      $region17: #{spat_attn_forward.1} parent=11 // pred_check
        %p227 = pneg %p83
      $region18: #{spat_attn_forward.1} parent=11 // pred_check_branch
        %229 = sbr.rel (%p227) target = $region20
      $region19: #{spat_attn_forward.1} parent=11 // pred_region
        _
      $region20: #{spat_attn_forward.1} parent=11 // pred_fallthru
        _
      // Predicated region
      $region21: #{spat_attn_forward.1} parent=11 // pred_check
        %p230 = pneg %p104
      $region22: #{spat_attn_forward.1} parent=11 // pred_check_branch
        %232 = sbr.rel (%p230) target = $region24
      $region23: #{spat_attn_forward.1} parent=11 // pred_region
        _
      $region24: #{spat_attn_forward.1} parent=11 // pred_fallthru
        _
      // Predicated region
      $region25: #{spat_attn_forward.1} parent=11 // pred_check
        %p233 = pneg %p125
      $region26: #{spat_attn_forward.1} parent=11 // pred_check_branch
        %235 = sbr.rel (%p233) target = $region28
      $region27: #{spat_attn_forward.1} parent=11 // pred_region
        _
      $region28: #{spat_attn_forward.1} parent=11 // pred_fallthru
        _
      // Predicated region
      $region29: #{spat_attn_forward.1} parent=11 // pred_check
        %p236 = pneg %p146
      $region30: #{spat_attn_forward.1} parent=11 // pred_check_branch
        %238 = sbr.rel (%p236) target = $region32
      $region31: #{spat_attn_forward.1} parent=11 // pred_region
        _
      $region32: #{spat_attn_forward.1} parent=11 // pred_fallthru
        _
      // Predicated region
      $region33: #{spat_attn_forward.1} parent=11 // pred_check
        %p239 = pneg %p167
      $region34: #{spat_attn_forward.1} parent=11 // pred_check_branch
        %241 = sbr.rel (%p239) target = $region36
      $region35: #{spat_attn_forward.1} parent=11 // pred_region
        _
      $region36: #{spat_attn_forward.1} parent=11 // pred_fallthru
        _
      // Predicated region
      $region37: #{spat_attn_forward.1} parent=11 // pred_check
        %p242 = pneg %p188
      $region38: #{spat_attn_forward.1} parent=11 // pred_check_branch
        %244 = sbr.rel (%p242) target = $region40
      $region39: #{spat_attn_forward.1} parent=11 // pred_region
        _
      $region40: #{spat_attn_forward.1} parent=11 // pred_fallthru
        _
    $region12: #{spat_attn_forward.1} parent=5 // pred_fallthru
      _
    %p245 = scmp.lt.s32.totalorder %s15, 2
    // Predicated region
    $region41: #{spat_attn_forward.1} parent=5 // pred_check
      %p246 = pneg %p245
    $region42: #{spat_attn_forward.1} parent=5 // pred_check_branch
      %248 = sbr.rel (%p246) target = $region44
    $region43: #{spat_attn_forward.1} parent=5 // pred_region
      // Predicated region
      $region45: #{spat_attn_forward.1} parent=43 // pred_check
        %p249 = pneg %p35
      $region46: #{spat_attn_forward.1} parent=43 // pred_check_branch
        %251 = sbr.rel (%p249) target = $region48
      $region47: #{spat_attn_forward.1} parent=43 // pred_region
        %p252 = scmp.lt.s32.totalorder %s15, 1
        %s253 = scalar_select %p252, %s15, 1
        %s254 = smul.addr %s253, 8
        %s255 = smul.addr %s254, 4
        %s256 = scalar_lea.vmem %s0, %s255
      $region48: #{spat_attn_forward.1} parent=43 // pred_fallthru
        _
    $region44: #{spat_attn_forward.1} parent=5 // pred_fallthru
      _
    %p257 = scmp.le.s32.totalorder 1, %s15
    %p258 = scmp.lt.s32.totalorder %s15, 3
    %p259 = pnand %p257, %p258
    %p260 = pneg %p259
    // Predicated region
    $region49: #{spat_attn_forward.1} parent=5 // pred_check
      _
    $region50: #{spat_attn_forward.1} parent=5 // pred_check_branch
      %262 = sbr.rel (%p259) target = $region52
    $region51: #{spat_attn_forward.1} parent=5 // pred_region
      %s263 = ssub.s32 %s15, 1
      %p264 = scmp.lt.s32.totalorder %s20, 1
      %s265 = scalar_select %p264, %s20, 1
      %s266 = smul.addr %s265, 8
      %s267 = smul.addr %s266, 4
      %s268 = scalar_lea.vmem %s0, %s267
      %p269 = pneg %p41
      %p270 = pneg %p38
      %p271 = pneg %p62
      %p272 = pneg %p59
      %p273 = pneg %p83
      %p274 = pneg %p80
      %p275 = pneg %p104
      %p276 = pneg %p101
      %p277 = pneg %p125
      %p278 = pneg %p122
      %p279 = pneg %p146
      %p280 = pneg %p143
      %p281 = pneg %p167
      %p282 = pneg %p164
      %p283 = pneg %p188
      %p284 = pneg %p185
      %p285 = pneg %p209
      %p286 = pneg %p206
      %p287 = scmp.lt.s32.totalorder %s20, 1
      %s288 = scalar_select %p287, %s20, 1
      %s289 = smul.addr %s288, 8
      %s290 = smul.addr %s289, 4
      %s291 = scalar_lea.vmem %s0, %s290
      %p293 = scmp.eq.s32.totalorder %s20, 0
      // Predicated region
      $region53: #{spat_attn_forward.1} parent=51 // pred_check
        %p294 = pneg %p293
      $region54: #{spat_attn_forward.1} parent=51 // pred_check_branch
        %296 = sbr.rel (%p294) target = $region56
      $region55: #{spat_attn_forward.1} parent=51 // pred_region
        %vm297 = vcmask 7168
        %298 = vst.msk [vmem:[#allocation2] sm:$0xff] %vm297, 0.0
        %299 = vst.msk [vmem:[#allocation2 + $0x8] sm:$0xff] %vm297, 0.0
        %300 = vst.msk [vmem:[#allocation2 + $0x10] sm:$0xff] %vm297, 0.0
        %301 = vst.msk [vmem:[#allocation2 + $0x18] sm:$0xff] %vm297, 0.0
        %302 = vst.msk [vmem:[#allocation3] sm:$0xff] %vm297, 0.0
        %303 = vst.msk [vmem:[#allocation3 + $0x8] sm:$0xff] %vm297, 0.0
        %304 = vst.msk [vmem:[#allocation3 + $0x10] sm:$0xff] %vm297, 0.0
        %305 = vst.msk [vmem:[#allocation3 + $0x18] sm:$0xff] %vm297, 0.0
      $region56: #{spat_attn_forward.1} parent=51 // pred_fallthru
        _
      %v306 = vld [vmem:[%s291] sm:$0xff]
      %v307 = vld [vmem:[%s291 + $0x8] sm:$0xff]
      %v308 = vld [vmem:[%s291 + $0x10] sm:$0xff]
      %v309 = vld [vmem:[%s291 + $0x18] sm:$0xff]
      %v310 = vld [vmem:[%s3] sm:$0xf]
      %v311 = vld [vmem:[%s3 + $0x4] sm:$0xf]
      %v312 = vld [vmem:[%s3 + $0x8] sm:$0xf]
      %v313 = vld [vmem:[%s3 + $0xc] sm:$0xf]
      %v314 = vld [vmem:[%s4] sm:$0xff]
      %v315 = vld [vmem:[%s4 + $0x8] sm:$0xff]
      %v316 = vld [vmem:[%s4 + $0x10] sm:$0xff]
      %v317 = vld [vmem:[%s4 + $0x18] sm:$0xff]
      %319 = vset.pattern.permute.xlu0 0
      %320 = vperm.xlu0 %319, %v314
      %v321 = vpop.permute.xlu0 %320
      %324 = vset.pattern.permute.xlu0 0
      %325 = vperm.xlu0 %324, %v315
      %v326 = vpop.permute.xlu0 %325
      %329 = vset.pattern.permute.xlu0 0
      %330 = vperm.xlu0 %329, %v316
      %v331 = vpop.permute.xlu0 %330
      %334 = vset.pattern.permute.xlu0 0
      %335 = vperm.xlu0 %334, %v317
      %v336 = vpop.permute.xlu0 %335
      %v342 = vunpack.c.l.b16 %v310
      %v343 = vunpack.c.l.b16 %v311
      %v344 = vunpack.c.l.b16 %v312
      %v345 = vunpack.c.l.b16 %v313
      %v346 = vpack.c.b16 %v343, %v342
      %v347 = vpack.c.b16 %v345, %v344
      %v352 = vunpack.c.l.b16 %v306
      %v353 = vunpack.c.h.b16 %v306
      %v354 = vunpack.c.l.b16 %v307
      %v355 = vunpack.c.h.b16 %v307
      %v356 = vunpack.c.l.b16 %v308
      %v357 = vunpack.c.h.b16 %v308
      %v358 = vunpack.c.l.b16 %v309
      %v359 = vunpack.c.h.b16 %v309
      %v360 = vpack.c.b16 %v354, %v352
      %v361 = vpack.c.b16 %v355, %v353
      %v362 = vpack.c.b16 %v358, %v356
      %v363 = vpack.c.b16 %v359, %v357
      %vm368 = vcmask 261120
      %v370 = vsel %vm368, %v346, 0
      %v373 = vsel %vm368, %v347, 0
      %375 = vmatprep.subr.bf16.mxu0 %v361
      %376 = vmatpush1.bf16.msra.mxu0 %v360
      %377 = vmatprep.subr.bf16.mxu0 %v363
      %378 = vmatpush1.bf16.msra.mxu0 %v362
      %379 = vmatprep.subr.bf16.mxu0 0
      %380 = vmatpush1.bf16.msra.mxu0 0
      %381 = vmatprep.subr.bf16.mxu0 0
      %382 = vmatpush1.bf16.msra.mxu0 0
      %383 = vmatprep.subr.bf16.mxu0 0
      %384 = vmatpush1.bf16.msra.mxu0 0
      %385 = vmatprep.subr.bf16.mxu0 0
      %386 = vmatpush1.bf16.msra.mxu0 0
      %387 = vmatprep.subr.bf16.mxu0 0
      %388 = vmatpush1.bf16.msra.mxu0 0
      %389 = vmatprep.subr.bf16.mxu0 0
      %390 = vmatpush1.bf16.msra.mxu0 0
      %391 = vmatprep.subr.bf16.mxu0 0
      %392 = vmatpush1.bf16.msra.mxu0 0
      %393 = vmatprep.subr.bf16.mxu0 0
      %394 = vmatpush1.bf16.msra.mxu0 0
      %395 = vmatprep.subr.bf16.mxu0 0
      %396 = vmatpush1.bf16.msra.mxu0 0
      %397 = vmatprep.subr.bf16.mxu0 0
      %398 = vmatpush1.bf16.msra.mxu0 0
      %399 = vmatprep.subr.bf16.mxu0 0
      %400 = vmatpush1.bf16.msra.mxu0 0
      %401 = vmatprep.subr.bf16.mxu0 0
      %402 = vmatpush1.bf16.msra.mxu0 0
      %403 = vmatprep.subr.bf16.mxu0 0
      %404 = vmatpush1.bf16.msra.mxu0 0
      %405 = vmatprep.subr.bf16.mxu0 0
      %406 = vmatpush1.bf16.msra.mxu0 0
      %407 = vmatprep.mubr.bf16.mxu0 0
      %408 = vmatmul.mubr.bf16.gmra.mrb[0].mxu0 %v370
      %v409 = vpop.f32.mrb[0].mxu0
      %v410 = vadd.f32 %v321, %v409
      %v411 = vpop.f32.mrb[0].mxu0
      %v412 = vadd.f32 %v321, %v411
      %v413 = vpop.f32.mrb[0].mxu0
      %v414 = vadd.f32 %v326, %v413
      %v415 = vpop.f32.mrb[0].mxu0
      %v416 = vadd.f32 %v326, %v415
      %417 = vmatprep.mubr.bf16.mxu0 0
      %418 = vmatmul.mubr.bf16.gmra.mrb[0].mxu0 %v373
      %v419 = vpop.f32.mrb[0].mxu0
      %v420 = vadd.f32 %v331, %v419
      %v421 = vpop.f32.mrb[0].mxu0
      %v422 = vadd.f32 %v331, %v421
      %v423 = vpop.f32.mrb[0].mxu0
      %v424 = vadd.f32 %v336, %v423
      %v425 = vpop.f32.mrb[0].mxu0
      %v426 = vadd.f32 %v336, %v425
      %427 = vdwg.mxu0
      %v428 = vld [vmem:[%s1] sm:$0xf]
      %v429 = vld [vmem:[%s1 + $0x4] sm:$0xf]
      %v430 = vld [vmem:[%s1 + $0x8] sm:$0xf]
      %v431 = vld [vmem:[%s1 + $0xc] sm:$0xf]
      %v436 = vunpack.c.l.b16 %v428
      %v437 = vunpack.c.l.b16 %v429
      %v438 = vunpack.c.l.b16 %v430
      %v439 = vunpack.c.l.b16 %v431
      %v440 = vpack.c.b16 %v437, %v436
      %v441 = vpack.c.b16 %v439, %v438
      %v443 = vsel %vm368, %v440, 0
      %v446 = vsel %vm368, %v441, 0
      %448 = vmatprep.subr.bf16.mxu0 %v361
      %449 = vmatpush1.bf16.msra.mxu0 %v360
      %450 = vmatprep.subr.bf16.mxu0 %v363
      %451 = vmatpush1.bf16.msra.mxu0 %v362
      %452 = vmatprep.subr.bf16.mxu0 0
      %453 = vmatpush1.bf16.msra.mxu0 0
      %454 = vmatprep.subr.bf16.mxu0 0
      %455 = vmatpush1.bf16.msra.mxu0 0
      %456 = vmatprep.subr.bf16.mxu0 0
      %457 = vmatpush1.bf16.msra.mxu0 0
      %458 = vmatprep.subr.bf16.mxu0 0
      %459 = vmatpush1.bf16.msra.mxu0 0
      %460 = vmatprep.subr.bf16.mxu0 0
      %461 = vmatpush1.bf16.msra.mxu0 0
      %462 = vmatprep.subr.bf16.mxu0 0
      %463 = vmatpush1.bf16.msra.mxu0 0
      %464 = vmatprep.subr.bf16.mxu0 0
      %465 = vmatpush1.bf16.msra.mxu0 0
      %466 = vmatprep.subr.bf16.mxu0 0
      %467 = vmatpush1.bf16.msra.mxu0 0
      %468 = vmatprep.subr.bf16.mxu0 0
      %469 = vmatpush1.bf16.msra.mxu0 0
      %470 = vmatprep.subr.bf16.mxu0 0
      %471 = vmatpush1.bf16.msra.mxu0 0
      %472 = vmatprep.subr.bf16.mxu0 0
      %473 = vmatpush1.bf16.msra.mxu0 0
      %474 = vmatprep.subr.bf16.mxu0 0
      %475 = vmatpush1.bf16.msra.mxu0 0
      %476 = vmatprep.subr.bf16.mxu0 0
      %477 = vmatpush1.bf16.msra.mxu0 0
      %478 = vmatprep.subr.bf16.mxu0 0
      %479 = vmatpush1.bf16.msra.mxu0 0
      %480 = vmatprep.mubr.bf16.mxu0 0
      %481 = vmatmul.mubr.bf16.gmra.mrb[0].mxu0 %v443
      %v482 = vpop.f32.mrb[0].mxu0
      %v483 = vadd.f32 0.0, %v482
      %v484 = vpop.f32.mrb[0].mxu0
      %v485 = vadd.f32 0.0, %v484
      %v486 = vpop.f32.mrb[0].mxu0
      %v487 = vadd.f32 0.0, %v486
      %v488 = vpop.f32.mrb[0].mxu0
      %v489 = vadd.f32 0.0, %v488
      %490 = vmatprep.mubr.bf16.mxu0 0
      %491 = vmatmul.mubr.bf16.gmra.mrb[0].mxu0 %v446
      %v492 = vpop.f32.mrb[0].mxu0
      %v493 = vadd.f32 0.0, %v492
      %v494 = vpop.f32.mrb[0].mxu0
      %v495 = vadd.f32 0.0, %v494
      %v496 = vpop.f32.mrb[0].mxu0
      %v497 = vadd.f32 0.0, %v496
      %v498 = vpop.f32.mrb[0].mxu0
      %v499 = vadd.f32 0.0, %v498
      %500 = vdwg.mxu0
      %v501 = vld [vmem:[%s2] sm:$0x1]
      %v503 = vsel %vm368, %v501, 0
      %505 = vmatprep.subr.bf16.mxu0 %v361
      %506 = vmatpush1.bf16.msra.mxu0 %v360
      %507 = vmatprep.subr.bf16.mxu0 %v363
      %508 = vmatpush1.bf16.msra.mxu0 %v362
      %509 = vmatprep.subr.bf16.mxu0 0
      %510 = vmatpush1.bf16.msra.mxu0 0
      %511 = vmatprep.subr.bf16.mxu0 0
      %512 = vmatpush1.bf16.msra.mxu0 0
      %513 = vmatprep.subr.bf16.mxu0 0
      %514 = vmatpush1.bf16.msra.mxu0 0
      %515 = vmatprep.subr.bf16.mxu0 0
      %516 = vmatpush1.bf16.msra.mxu0 0
      %517 = vmatprep.subr.bf16.mxu0 0
      %518 = vmatpush1.bf16.msra.mxu0 0
      %519 = vmatprep.subr.bf16.mxu0 0
      %520 = vmatpush1.bf16.msra.mxu0 0
      %521 = vmatprep.subr.bf16.mxu0 0
      %522 = vmatpush1.bf16.msra.mxu0 0
      %523 = vmatprep.subr.bf16.mxu0 0
      %524 = vmatpush1.bf16.msra.mxu0 0
      %525 = vmatprep.subr.bf16.mxu0 0
      %526 = vmatpush1.bf16.msra.mxu0 0
      %527 = vmatprep.subr.bf16.mxu0 0
      %528 = vmatpush1.bf16.msra.mxu0 0
      %529 = vmatprep.subr.bf16.mxu0 0
      %530 = vmatpush1.bf16.msra.mxu0 0
      %531 = vmatprep.subr.bf16.mxu0 0
      %532 = vmatpush1.bf16.msra.mxu0 0
      %533 = vmatprep.subr.bf16.mxu0 0
      %534 = vmatpush1.bf16.msra.mxu0 0
      %535 = vmatprep.subr.bf16.mxu0 0
      %536 = vmatpush1.bf16.msra.mxu0 0
      %537 = vmatprep.mubr.bf16.mxu0 0
      %538 = vmatmul.mubr.bf16.gmra.mrb[0].mxu0 %v503
      %v539 = vpop.f32.mrb[0].mxu0
      %v540 = vadd.f32 0.0, %v539
      %v541 = vpop.f32.mrb[0].mxu0
      %v542 = vadd.f32 0.0, %v541
      %v543 = vpop.f32.mrb[0].mxu0
      %v544 = vpop.f32.mrb[0].mxu0
      %545 = vdwg.mxu0
      %v546 = vpack.c.bf16 %v487, %v483
      %v547 = vpack.c.bf16 %v489, %v485
      %v548 = vpack.c.bf16 %v497, %v493
      %v549 = vpack.c.bf16 %v499, %v495
      %v550 = vlaneseq
      %v551 = vshrl.u32 %v550, 7
      %v552 = vsub.s32 0, %v551
      %v553 = vrot.slane %v540, %v552
      %v554 = vlaneseq
      %v555 = vshrl.u32 %v554, 7
      %v556 = vsub.s32 0, %v555
      %v557 = vrot.slane %v542, %v556
      %558 = vxpose.xlu0.c.b16.start [1/8] %v360, 128
      %559 = vxpose.xlu0.c.b16.cont [2/8] %v362, 128
      %560 = vxpose.xlu0.c.b16.cont [3/8] 0, 128
      %561 = vxpose.xlu0.c.b16.cont [4/8] 0, 128
      %562 = vxpose.xlu0.c.b16.cont [5/8] 0, 128
      %563 = vxpose.xlu0.c.b16.cont [6/8] 0, 128
      %564 = vxpose.xlu0.c.b16.cont [7/8] 0, 128
      %565 = vxpose.xlu0.c.b16.end [8/8] 0, 128
      %v566 = vpop.trf.xlu0
      %v567 = vpop.trf.xlu0
      %v568 = vpop.trf.xlu0
      %v569 = vpop.trf.xlu0
      %v570 = vpop.trf.xlu0
      %v571 = vpop.trf.xlu0
      %v572 = vpop.trf.xlu0
      %v573 = vpop.trf.xlu0
      %574 = vxpose.xlu0.c.b16.start [1/8] %v361, 128
      %575 = vxpose.xlu0.c.b16.cont [2/8] %v363, 128
      %576 = vxpose.xlu0.c.b16.cont [3/8] 0, 128
      %577 = vxpose.xlu0.c.b16.cont [4/8] 0, 128
      %578 = vxpose.xlu0.c.b16.cont [5/8] 0, 128
      %579 = vxpose.xlu0.c.b16.cont [6/8] 0, 128
      %580 = vxpose.xlu0.c.b16.cont [7/8] 0, 128
      %581 = vxpose.xlu0.c.b16.end [8/8] 0, 128
      %v582 = vpop.trf.xlu0
      %v583 = vpop.trf.xlu0
      %v584 = vpop.trf.xlu0
      %v585 = vpop.trf.xlu0
      %v586 = vpop.trf.xlu0
      %v587 = vpop.trf.xlu0
      %v588 = vpop.trf.xlu0
      %v589 = vpop.trf.xlu0
      %v591 = vsel %vm368, %v566, 0
      %v594 = vsel %vm368, %v567, 0
      %v597 = vsel %vm368, %v568, 0
      %v600 = vsel %vm368, %v569, 0
      %v603 = vsel %vm368, %v570, 0
      %v606 = vsel %vm368, %v571, 0
      %v609 = vsel %vm368, %v572, 0
      %v612 = vsel %vm368, %v573, 0
      %v615 = vsel %vm368, %v582, 0
      %v618 = vsel %vm368, %v583, 0
      %v621 = vsel %vm368, %v584, 0
      %v624 = vsel %vm368, %v585, 0
      %v627 = vsel %vm368, %v586, 0
      %v630 = vsel %vm368, %v587, 0
      %v633 = vsel %vm368, %v588, 0
      %v636 = vsel %vm368, %v589, 0
      %638 = vmatprep.subr.bf16.mxu0 %v547
      %639 = vmatpush1.bf16.msra.mxu0 %v546
      %640 = vmatprep.subr.bf16.mxu0 %v549
      %641 = vmatpush1.bf16.msra.mxu0 %v548
      %642 = vmatprep.subr.bf16.mxu0 0
      %643 = vmatpush1.bf16.msra.mxu0 0
      %644 = vmatprep.subr.bf16.mxu0 0
      %645 = vmatpush1.bf16.msra.mxu0 0
      %646 = vmatprep.subr.bf16.mxu0 0
      %647 = vmatpush1.bf16.msra.mxu0 0
      %648 = vmatprep.subr.bf16.mxu0 0
      %649 = vmatpush1.bf16.msra.mxu0 0
      %650 = vmatprep.subr.bf16.mxu0 0
      %651 = vmatpush1.bf16.msra.mxu0 0
      %652 = vmatprep.subr.bf16.mxu0 0
      %653 = vmatpush1.bf16.msra.mxu0 0
      %654 = vmatprep.subr.bf16.mxu0 0
      %655 = vmatpush1.bf16.msra.mxu0 0
      %656 = vmatprep.subr.bf16.mxu0 0
      %657 = vmatpush1.bf16.msra.mxu0 0
      %658 = vmatprep.subr.bf16.mxu0 0
      %659 = vmatpush1.bf16.msra.mxu0 0
      %660 = vmatprep.subr.bf16.mxu0 0
      %661 = vmatpush1.bf16.msra.mxu0 0
      %662 = vmatprep.subr.bf16.mxu0 0
      %663 = vmatpush1.bf16.msra.mxu0 0
      %664 = vmatprep.subr.bf16.mxu0 0
      %665 = vmatpush1.bf16.msra.mxu0 0
      %666 = vmatprep.subr.bf16.mxu0 0
      %667 = vmatpush1.bf16.msra.mxu0 0
      %668 = vmatprep.subr.bf16.mxu0 0
      %669 = vmatpush1.bf16.msra.mxu0 0
      %670 = vmatprep.mubr.bf16.mxu0 0
      %671 = vmatmul.mubr.bf16.gmra.mrb[0].mxu0 %v591
      %v672 = vpop.f32.mrb[0].mxu0
      %v673 = vadd.f32 %v553, %v672
      %v674 = vpop.f32.mrb[0].mxu0
      %v675 = vadd.f32 %v557, %v674
      %v676 = vpop.f32.mrb[0].mxu0
      %v677 = vadd.f32 %v553, %v676
      %v678 = vpop.f32.mrb[0].mxu0
      %v679 = vadd.f32 %v557, %v678
      %680 = vmatprep.mubr.bf16.mxu0 0
      %681 = vmatmul.mubr.bf16.gmra.mrb[0].mxu0 %v594
      %v682 = vpop.f32.mrb[0].mxu0
      %v683 = vadd.f32 %v553, %v682
      %v684 = vpop.f32.mrb[0].mxu0
      %v685 = vadd.f32 %v557, %v684
      %v686 = vpop.f32.mrb[0].mxu0
      %v687 = vadd.f32 %v553, %v686
      %v688 = vpop.f32.mrb[0].mxu0
      %v689 = vadd.f32 %v557, %v688
      %690 = vmatprep.mubr.bf16.mxu0 0
      %691 = vmatmul.mubr.bf16.gmra.mrb[0].mxu0 %v597
      %v692 = vpop.f32.mrb[0].mxu0
      %v693 = vadd.f32 %v553, %v692
      %v694 = vpop.f32.mrb[0].mxu0
      %v695 = vadd.f32 %v557, %v694
      %v696 = vpop.f32.mrb[0].mxu0
      %v697 = vadd.f32 %v553, %v696
      %v698 = vpop.f32.mrb[0].mxu0
      %v699 = vadd.f32 %v557, %v698
      %700 = vmatprep.mubr.bf16.mxu0 0
      %701 = vmatmul.mubr.bf16.gmra.mrb[0].mxu0 %v600
      %v702 = vpop.f32.mrb[0].mxu0
      %v703 = vadd.f32 %v553, %v702
      %v704 = vpop.f32.mrb[0].mxu0
      %v705 = vadd.f32 %v557, %v704
      %v706 = vpop.f32.mrb[0].mxu0
      %v707 = vadd.f32 %v553, %v706
      %v708 = vpop.f32.mrb[0].mxu0
      %v709 = vadd.f32 %v557, %v708
      %710 = vmatprep.mubr.bf16.mxu0 0
      %711 = vmatmul.mubr.bf16.gmra.mrb[0].mxu0 %v603
      %v712 = vpop.f32.mrb[0].mxu0
      %v713 = vadd.f32 %v553, %v712
      %v714 = vpop.f32.mrb[0].mxu0
      %v715 = vadd.f32 %v557, %v714
      %v716 = vpop.f32.mrb[0].mxu0
      %v717 = vadd.f32 %v553, %v716
      %v718 = vpop.f32.mrb[0].mxu0
      %v719 = vadd.f32 %v557, %v718
      %720 = vmatprep.mubr.bf16.mxu0 0
      %721 = vmatmul.mubr.bf16.gmra.mrb[0].mxu0 %v606
      %v722 = vpop.f32.mrb[0].mxu0
      %v723 = vadd.f32 %v553, %v722
      %v724 = vpop.f32.mrb[0].mxu0
      %v725 = vadd.f32 %v557, %v724
      %v726 = vpop.f32.mrb[0].mxu0
      %v727 = vadd.f32 %v553, %v726
      %v728 = vpop.f32.mrb[0].mxu0
      %v729 = vadd.f32 %v557, %v728
      %730 = vmatprep.mubr.bf16.mxu0 0
      %731 = vmatmul.mubr.bf16.gmra.mrb[0].mxu0 %v609
      %v732 = vpop.f32.mrb[0].mxu0
      %v733 = vadd.f32 %v553, %v732
      %v734 = vpop.f32.mrb[0].mxu0
      %v735 = vadd.f32 %v557, %v734
      %v736 = vpop.f32.mrb[0].mxu0
      %v737 = vadd.f32 %v553, %v736
      %v738 = vpop.f32.mrb[0].mxu0
      %v739 = vadd.f32 %v557, %v738
      %740 = vmatprep.mubr.bf16.mxu0 0
      %741 = vmatmul.mubr.bf16.gmra.mrb[0].mxu0 %v612
      %v742 = vpop.f32.mrb[0].mxu0
      %v743 = vadd.f32 %v553, %v742
      %v744 = vpop.f32.mrb[0].mxu0
      %v745 = vadd.f32 %v557, %v744
      %v746 = vpop.f32.mrb[0].mxu0
      %v747 = vadd.f32 %v553, %v746
      %v748 = vpop.f32.mrb[0].mxu0
      %v749 = vadd.f32 %v557, %v748
      %750 = vmatprep.mubr.bf16.mxu0 0
      %751 = vmatmul.mubr.bf16.gmra.mrb[0].mxu0 %v615
      %v752 = vpop.f32.mrb[0].mxu0
      %v753 = vadd.f32 %v553, %v752
      %v754 = vpop.f32.mrb[0].mxu0
      %v755 = vadd.f32 %v557, %v754
      %v756 = vpop.f32.mrb[0].mxu0
      %v757 = vadd.f32 %v553, %v756
      %v758 = vpop.f32.mrb[0].mxu0
      %v759 = vadd.f32 %v557, %v758
      %760 = vmatprep.mubr.bf16.mxu0 0
      %761 = vmatmul.mubr.bf16.gmra.mrb[0].mxu0 %v618
      %v762 = vpop.f32.mrb[0].mxu0
      %v763 = vadd.f32 %v553, %v762
      %v764 = vpop.f32.mrb[0].mxu0
      %v765 = vadd.f32 %v557, %v764
      %v766 = vpop.f32.mrb[0].mxu0
      %v767 = vadd.f32 %v553, %v766
      %v768 = vpop.f32.mrb[0].mxu0
      %v769 = vadd.f32 %v557, %v768
      %770 = vmatprep.mubr.bf16.mxu0 0
      %771 = vmatmul.mubr.bf16.gmra.mrb[0].mxu0 %v621
      %v772 = vpop.f32.mrb[0].mxu0
      %v773 = vadd.f32 %v553, %v772
      %v774 = vpop.f32.mrb[0].mxu0
      %v775 = vadd.f32 %v557, %v774
      %v776 = vpop.f32.mrb[0].mxu0
      %v777 = vadd.f32 %v553, %v776
      %v778 = vpop.f32.mrb[0].mxu0
      %v779 = vadd.f32 %v557, %v778
      %780 = vmatprep.mubr.bf16.mxu0 0
      %781 = vmatmul.mubr.bf16.gmra.mrb[0].mxu0 %v624
      %v782 = vpop.f32.mrb[0].mxu0
      %v783 = vadd.f32 %v553, %v782
      %v784 = vpop.f32.mrb[0].mxu0
      %v785 = vadd.f32 %v557, %v784
      %v786 = vpop.f32.mrb[0].mxu0
      %v787 = vadd.f32 %v553, %v786
      %v788 = vpop.f32.mrb[0].mxu0
      %v789 = vadd.f32 %v557, %v788
      %790 = vmatprep.mubr.bf16.mxu0 0
      %791 = vmatmul.mubr.bf16.gmra.mrb[0].mxu0 %v627
      %v792 = vpop.f32.mrb[0].mxu0
      %v793 = vadd.f32 %v553, %v792
      %v794 = vpop.f32.mrb[0].mxu0
      %v795 = vadd.f32 %v557, %v794
      %v796 = vpop.f32.mrb[0].mxu0
      %v797 = vadd.f32 %v553, %v796
      %v798 = vpop.f32.mrb[0].mxu0
      %v799 = vadd.f32 %v557, %v798
      %800 = vmatprep.mubr.bf16.mxu0 0
      %801 = vmatmul.mubr.bf16.gmra.mrb[0].mxu0 %v630
      %v802 = vpop.f32.mrb[0].mxu0
      %v803 = vadd.f32 %v553, %v802
      %v804 = vpop.f32.mrb[0].mxu0
      %v805 = vadd.f32 %v557, %v804
      %v806 = vpop.f32.mrb[0].mxu0
      %v807 = vadd.f32 %v553, %v806
      %v808 = vpop.f32.mrb[0].mxu0
      %v809 = vadd.f32 %v557, %v808
      %810 = vmatprep.mubr.bf16.mxu0 0
      %811 = vmatmul.mubr.bf16.gmra.mrb[0].mxu0 %v633
      %v812 = vpop.f32.mrb[0].mxu0
      %v813 = vadd.f32 %v553, %v812
      %v814 = vpop.f32.mrb[0].mxu0
      %v815 = vadd.f32 %v557, %v814
      %v816 = vpop.f32.mrb[0].mxu0
      %v817 = vadd.f32 %v553, %v816
      %v818 = vpop.f32.mrb[0].mxu0
      %v819 = vadd.f32 %v557, %v818
      %820 = vmatprep.mubr.bf16.mxu0 0
      %821 = vmatmul.mubr.bf16.gmra.mrb[0].mxu0 %v636
      %v822 = vpop.f32.mrb[0].mxu0
      %v823 = vadd.f32 %v553, %v822
      %v824 = vpop.f32.mrb[0].mxu0
      %v825 = vadd.f32 %v557, %v824
      %v826 = vpop.f32.mrb[0].mxu0
      %v827 = vadd.f32 %v553, %v826
      %v828 = vpop.f32.mrb[0].mxu0
      %v829 = vadd.f32 %v557, %v828
      %830 = vdwg.mxu0
      %v831 = vmax.f32 %v673, %v675
      %832 = vmax.xlane.f32.xlu0 %v831
      %v833 = vpop.xlane.xlu0 %832
      %v834 = vmax.f32 %v677, %v679
      %835 = vmax.xlane.f32.xlu0 %v834
      %v836 = vpop.xlane.xlu0 %835
      %v837 = vmax.f32 %v683, %v685
      %838 = vmax.xlane.f32.xlu0 %v837
      %v839 = vpop.xlane.xlu0 %838
      %v840 = vmax.f32 %v687, %v689
      %841 = vmax.xlane.f32.xlu0 %v840
      %v842 = vpop.xlane.xlu0 %841
      %v843 = vmax.f32 %v693, %v695
      %844 = vmax.xlane.f32.xlu0 %v843
      %v845 = vpop.xlane.xlu0 %844
      %v846 = vmax.f32 %v697, %v699
      %847 = vmax.xlane.f32.xlu0 %v846
      %v848 = vpop.xlane.xlu0 %847
      %v849 = vmax.f32 %v703, %v705
      %850 = vmax.xlane.f32.xlu0 %v849
      %v851 = vpop.xlane.xlu0 %850
      %v852 = vmax.f32 %v707, %v709
      %853 = vmax.xlane.f32.xlu0 %v852
      %v854 = vpop.xlane.xlu0 %853
      %v855 = vmax.f32 %v713, %v715
      %856 = vmax.xlane.f32.xlu0 %v855
      %v857 = vpop.xlane.xlu0 %856
      %v858 = vmax.f32 %v717, %v719
      %859 = vmax.xlane.f32.xlu0 %v858
      %v860 = vpop.xlane.xlu0 %859
      %v861 = vmax.f32 %v723, %v725
      %862 = vmax.xlane.f32.xlu0 %v861
      %v863 = vpop.xlane.xlu0 %862
      %v864 = vmax.f32 %v727, %v729
      %865 = vmax.xlane.f32.xlu0 %v864
      %v866 = vpop.xlane.xlu0 %865
      %v867 = vmax.f32 %v733, %v735
      %868 = vmax.xlane.f32.xlu0 %v867
      %v869 = vpop.xlane.xlu0 %868
      %v870 = vmax.f32 %v737, %v739
      %871 = vmax.xlane.f32.xlu0 %v870
      %v872 = vpop.xlane.xlu0 %871
      %v873 = vmax.f32 %v743, %v745
      %874 = vmax.xlane.f32.xlu0 %v873
      %v875 = vpop.xlane.xlu0 %874
      %v876 = vmax.f32 %v747, %v749
      %877 = vmax.xlane.f32.xlu0 %v876
      %v878 = vpop.xlane.xlu0 %877
      %v879 = vmax.f32 %v753, %v755
      %880 = vmax.xlane.f32.xlu0 %v879
      %v881 = vpop.xlane.xlu0 %880
      %v882 = vmax.f32 %v757, %v759
      %883 = vmax.xlane.f32.xlu0 %v882
      %v884 = vpop.xlane.xlu0 %883
      %v885 = vmax.f32 %v763, %v765
      %886 = vmax.xlane.f32.xlu0 %v885
      %v887 = vpop.xlane.xlu0 %886
      %v888 = vmax.f32 %v767, %v769
      %889 = vmax.xlane.f32.xlu0 %v888
      %v890 = vpop.xlane.xlu0 %889
      %v891 = vmax.f32 %v773, %v775
      %892 = vmax.xlane.f32.xlu0 %v891
      %v893 = vpop.xlane.xlu0 %892
      %v894 = vmax.f32 %v777, %v779
      %895 = vmax.xlane.f32.xlu0 %v894
      %v896 = vpop.xlane.xlu0 %895
      %v897 = vmax.f32 %v783, %v785
      %898 = vmax.xlane.f32.xlu0 %v897
      %v899 = vpop.xlane.xlu0 %898
      %v900 = vmax.f32 %v787, %v789
      %901 = vmax.xlane.f32.xlu0 %v900
      %v902 = vpop.xlane.xlu0 %901
      %v903 = vmax.f32 %v793, %v795
      %904 = vmax.xlane.f32.xlu0 %v903
      %v905 = vpop.xlane.xlu0 %904
      %v906 = vmax.f32 %v797, %v799
      %907 = vmax.xlane.f32.xlu0 %v906
      %v908 = vpop.xlane.xlu0 %907
      %v909 = vmax.f32 %v803, %v805
      %910 = vmax.xlane.f32.xlu0 %v909
      %v911 = vpop.xlane.xlu0 %910
      %v912 = vmax.f32 %v807, %v809
      %913 = vmax.xlane.f32.xlu0 %v912
      %v914 = vpop.xlane.xlu0 %913
      %v915 = vmax.f32 %v813, %v815
      %916 = vmax.xlane.f32.xlu0 %v915
      %v917 = vpop.xlane.xlu0 %916
      %v918 = vmax.f32 %v817, %v819
      %919 = vmax.xlane.f32.xlu0 %v918
      %v920 = vpop.xlane.xlu0 %919
      %v921 = vmax.f32 %v823, %v825
      %922 = vmax.xlane.f32.xlu0 %v921
      %v923 = vpop.xlane.xlu0 %922
      %v924 = vmax.f32 %v827, %v829
      %925 = vmax.xlane.f32.xlu0 %v924
      %v926 = vpop.xlane.xlu0 %925
      %v927 = vsub.f32 %v673, %v833
      %v928 = vsub.f32 %v675, %v833
      %v929 = vsub.f32 %v677, %v836
      %v930 = vsub.f32 %v679, %v836
      %v931 = vsub.f32 %v683, %v839
      %v932 = vsub.f32 %v685, %v839
      %v933 = vsub.f32 %v687, %v842
      %v934 = vsub.f32 %v689, %v842
      %v935 = vsub.f32 %v693, %v845
      %v936 = vsub.f32 %v695, %v845
      %v937 = vsub.f32 %v697, %v848
      %v938 = vsub.f32 %v699, %v848
      %v939 = vsub.f32 %v703, %v851
      %v940 = vsub.f32 %v705, %v851
      %v941 = vsub.f32 %v707, %v854
      %v942 = vsub.f32 %v709, %v854
      %v943 = vsub.f32 %v713, %v857
      %v944 = vsub.f32 %v715, %v857
      %v945 = vsub.f32 %v717, %v860
      %v946 = vsub.f32 %v719, %v860
      %v947 = vsub.f32 %v723, %v863
      %v948 = vsub.f32 %v725, %v863
      %v949 = vsub.f32 %v727, %v866
      %v950 = vsub.f32 %v729, %v866
      %v951 = vsub.f32 %v733, %v869
      %v952 = vsub.f32 %v735, %v869
      %v953 = vsub.f32 %v737, %v872
      %v954 = vsub.f32 %v739, %v872
      %v955 = vsub.f32 %v743, %v875
      %v956 = vsub.f32 %v745, %v875
      %v957 = vsub.f32 %v747, %v878
      %v958 = vsub.f32 %v749, %v878
      %v959 = vsub.f32 %v753, %v881
      %v960 = vsub.f32 %v755, %v881
      %v961 = vsub.f32 %v757, %v884
      %v962 = vsub.f32 %v759, %v884
      %v963 = vsub.f32 %v763, %v887
      %v964 = vsub.f32 %v765, %v887
      %v965 = vsub.f32 %v767, %v890
      %v966 = vsub.f32 %v769, %v890
      %v967 = vsub.f32 %v773, %v893
      %v968 = vsub.f32 %v775, %v893
      %v969 = vsub.f32 %v777, %v896
      %v970 = vsub.f32 %v779, %v896
      %v971 = vsub.f32 %v783, %v899
      %v972 = vsub.f32 %v785, %v899
      %v973 = vsub.f32 %v787, %v902
      %v974 = vsub.f32 %v789, %v902
      %v975 = vsub.f32 %v793, %v905
      %v976 = vsub.f32 %v795, %v905
      %v977 = vsub.f32 %v797, %v908
      %v978 = vsub.f32 %v799, %v908
      %v979 = vsub.f32 %v803, %v911
      %v980 = vsub.f32 %v805, %v911
      %v981 = vsub.f32 %v807, %v914
      %v982 = vsub.f32 %v809, %v914
      %v983 = vsub.f32 %v813, %v917
      %v984 = vsub.f32 %v815, %v917
      %v985 = vsub.f32 %v817, %v920
      %v986 = vsub.f32 %v819, %v920
      %v987 = vsub.f32 %v823, %v923
      %v988 = vsub.f32 %v825, %v923
      %v989 = vsub.f32 %v827, %v926
      %v990 = vsub.f32 %v829, %v926
      %v991 = vmul.f32 %v927, 1.442695
      %v992 = vpow.pop %v991
      %v993 = vmul.f32 %v928, 1.442695
      %v994 = vpow.pop %v993
      %v995 = vmul.f32 %v929, 1.442695
      %v996 = vpow.pop %v995
      %v997 = vmul.f32 %v930, 1.442695
      %v998 = vpow.pop %v997
      %v999 = vmul.f32 %v931, 1.442695
      %v1000 = vpow.pop %v999
      %v1001 = vmul.f32 %v932, 1.442695
      %v1002 = vpow.pop %v1001
      %v1003 = vmul.f32 %v933, 1.442695
      %v1004 = vpow.pop %v1003
      %v1005 = vmul.f32 %v934, 1.442695
      %v1006 = vpow.pop %v1005
      %v1007 = vmul.f32 %v935, 1.442695
      %v1008 = vpow.pop %v1007
      %v1009 = vmul.f32 %v936, 1.442695
      %v1010 = vpow.pop %v1009
      %v1011 = vmul.f32 %v937, 1.442695
      %v1012 = vpow.pop %v1011
      %v1013 = vmul.f32 %v938, 1.442695
      %v1014 = vpow.pop %v1013
      %v1015 = vmul.f32 %v939, 1.442695
      %v1016 = vpow.pop %v1015
      %v1017 = vmul.f32 %v940, 1.442695
      %v1018 = vpow.pop %v1017
      %v1019 = vmul.f32 %v941, 1.442695
      %v1020 = vpow.pop %v1019
      %v1021 = vmul.f32 %v942, 1.442695
      %v1022 = vpow.pop %v1021
      %v1023 = vmul.f32 %v943, 1.442695
      %v1024 = vpow.pop %v1023
      %v1025 = vmul.f32 %v944, 1.442695
      %v1026 = vpow.pop %v1025
      %v1027 = vmul.f32 %v945, 1.442695
      %v1028 = vpow.pop %v1027
      %v1029 = vmul.f32 %v946, 1.442695
      %v1030 = vpow.pop %v1029
      %v1031 = vmul.f32 %v947, 1.442695
      %v1032 = vpow.pop %v1031
      %v1033 = vmul.f32 %v948, 1.442695
      %v1034 = vpow.pop %v1033
      %v1035 = vmul.f32 %v949, 1.442695
      %v1036 = vpow.pop %v1035
      %v1037 = vmul.f32 %v950, 1.442695
      %v1038 = vpow.pop %v1037
      %v1039 = vmul.f32 %v951, 1.442695
      %v1040 = vpow.pop %v1039
      %v1041 = vmul.f32 %v952, 1.442695
      %v1042 = vpow.pop %v1041
      %v1043 = vmul.f32 %v953, 1.442695
      %v1044 = vpow.pop %v1043
      %v1045 = vmul.f32 %v954, 1.442695
      %v1046 = vpow.pop %v1045
      %v1047 = vmul.f32 %v955, 1.442695
      %v1048 = vpow.pop %v1047
      %v1049 = vmul.f32 %v956, 1.442695
      %v1050 = vpow.pop %v1049
      %v1051 = vmul.f32 %v957, 1.442695
      %v1052 = vpow.pop %v1051
      %v1053 = vmul.f32 %v958, 1.442695
      %v1054 = vpow.pop %v1053
      %v1055 = vmul.f32 %v959, 1.442695
      %v1056 = vpow.pop %v1055
      %v1057 = vmul.f32 %v960, 1.442695
      %v1058 = vpow.pop %v1057
      %v1059 = vmul.f32 %v961, 1.442695
      %v1060 = vpow.pop %v1059
      %v1061 = vmul.f32 %v962, 1.442695
      %v1062 = vpow.pop %v1061
      %v1063 = vmul.f32 %v963, 1.442695
      %v1064 = vpow.pop %v1063
      %v1065 = vmul.f32 %v964, 1.442695
      %v1066 = vpow.pop %v1065
      %v1067 = vmul.f32 %v965, 1.442695
      %v1068 = vpow.pop %v1067
      %v1069 = vmul.f32 %v966, 1.442695
      %v1070 = vpow.pop %v1069
      %v1071 = vmul.f32 %v967, 1.442695
      %v1072 = vpow.pop %v1071
      %v1073 = vmul.f32 %v968, 1.442695
      %v1074 = vpow.pop %v1073
      %v1075 = vmul.f32 %v969, 1.442695
      %v1076 = vpow.pop %v1075
      %v1077 = vmul.f32 %v970, 1.442695
      %v1078 = vpow.pop %v1077
      %v1079 = vmul.f32 %v971, 1.442695
      %v1080 = vpow.pop %v1079
      %v1081 = vmul.f32 %v972, 1.442695
      %v1082 = vpow.pop %v1081
      %v1083 = vmul.f32 %v973, 1.442695
      %v1084 = vpow.pop %v1083
      %v1085 = vmul.f32 %v974, 1.442695
      %v1086 = vpow.pop %v1085
      %v1087 = vmul.f32 %v975, 1.442695
      %v1088 = vpow.pop %v1087
      %v1089 = vmul.f32 %v976, 1.442695
      %v1090 = vpow.pop %v1089
      %v1091 = vmul.f32 %v977, 1.442695
      %v1092 = vpow.pop %v1091
      %v1093 = vmul.f32 %v978, 1.442695
      %v1094 = vpow.pop %v1093
      %v1095 = vmul.f32 %v979, 1.442695
      %v1096 = vpow.pop %v1095
      %v1097 = vmul.f32 %v980, 1.442695
      %v1098 = vpow.pop %v1097
      %v1099 = vmul.f32 %v981, 1.442695
      %v1100 = vpow.pop %v1099
      %v1101 = vmul.f32 %v982, 1.442695
      %v1102 = vpow.pop %v1101
      %v1103 = vmul.f32 %v983, 1.442695
      %v1104 = vpow.pop %v1103
      %v1105 = vmul.f32 %v984, 1.442695
      %v1106 = vpow.pop %v1105
      %v1107 = vmul.f32 %v985, 1.442695
      %v1108 = vpow.pop %v1107
      %v1109 = vmul.f32 %v986, 1.442695
      %v1110 = vpow.pop %v1109
      %v1111 = vmul.f32 %v987, 1.442695
      %v1112 = vpow.pop %v1111
      %v1113 = vmul.f32 %v988, 1.442695
      %v1114 = vpow.pop %v1113
      %v1115 = vmul.f32 %v989, 1.442695
      %v1116 = vpow.pop %v1115
      %v1117 = vmul.f32 %v990, 1.442695
      %v1118 = vpow.pop %v1117
      %v1119 = vadd.f32 %v992, %v994
      %1120 = vadd.xlane.f32.xlu0 %v1119
      %v1121 = vpop.xlane.xlu0 %1120
      %v1122 = vadd.f32 %v996, %v998
      %1123 = vadd.xlane.f32.xlu0 %v1122
      %v1124 = vpop.xlane.xlu0 %1123
      %v1125 = vadd.f32 %v1000, %v1002
      %1126 = vadd.xlane.f32.xlu0 %v1125
      %v1127 = vpop.xlane.xlu0 %1126
      %v1128 = vadd.f32 %v1004, %v1006
      %1129 = vadd.xlane.f32.xlu0 %v1128
      %v1130 = vpop.xlane.xlu0 %1129
      %v1131 = vadd.f32 %v1008, %v1010
      %1132 = vadd.xlane.f32.xlu0 %v1131
      %v1133 = vpop.xlane.xlu0 %1132
      %v1134 = vadd.f32 %v1012, %v1014
      %1135 = vadd.xlane.f32.xlu0 %v1134
      %v1136 = vpop.xlane.xlu0 %1135
      %v1137 = vadd.f32 %v1016, %v1018
      %1138 = vadd.xlane.f32.xlu0 %v1137
      %v1139 = vpop.xlane.xlu0 %1138
      %v1140 = vadd.f32 %v1020, %v1022
      %1141 = vadd.xlane.f32.xlu0 %v1140
      %v1142 = vpop.xlane.xlu0 %1141
      %v1143 = vadd.f32 %v1024, %v1026
      %1144 = vadd.xlane.f32.xlu0 %v1143
      %v1145 = vpop.xlane.xlu0 %1144
      %v1146 = vadd.f32 %v1028, %v1030
      %1147 = vadd.xlane.f32.xlu0 %v1146
      %v1148 = vpop.xlane.xlu0 %1147
      %v1149 = vadd.f32 %v1032, %v1034
      %1150 = vadd.xlane.f32.xlu0 %v1149
      %v1151 = vpop.xlane.xlu0 %1150
      %v1152 = vadd.f32 %v1036, %v1038
      %1153 = vadd.xlane.f32.xlu0 %v1152
      %v1154 = vpop.xlane.xlu0 %1153
      %v1155 = vadd.f32 %v1040, %v1042
      %1156 = vadd.xlane.f32.xlu0 %v1155
      %v1157 = vpop.xlane.xlu0 %1156
      %v1158 = vadd.f32 %v1044, %v1046
      %1159 = vadd.xlane.f32.xlu0 %v1158
      %v1160 = vpop.xlane.xlu0 %1159
      %v1161 = vadd.f32 %v1048, %v1050
      %1162 = vadd.xlane.f32.xlu0 %v1161
      %v1163 = vpop.xlane.xlu0 %1162
      %v1164 = vadd.f32 %v1052, %v1054
      %1165 = vadd.xlane.f32.xlu0 %v1164
      %v1166 = vpop.xlane.xlu0 %1165
      %v1167 = vadd.f32 %v1056, %v1058
      %1168 = vadd.xlane.f32.xlu0 %v1167
      %v1169 = vpop.xlane.xlu0 %1168
      %v1170 = vadd.f32 %v1060, %v1062
      %1171 = vadd.xlane.f32.xlu0 %v1170
      %v1172 = vpop.xlane.xlu0 %1171
      %v1173 = vadd.f32 %v1064, %v1066
      %1174 = vadd.xlane.f32.xlu0 %v1173
      %v1175 = vpop.xlane.xlu0 %1174
      %v1176 = vadd.f32 %v1068, %v1070
      %1177 = vadd.xlane.f32.xlu0 %v1176
      %v1178 = vpop.xlane.xlu0 %1177
      %v1179 = vadd.f32 %v1072, %v1074
      %1180 = vadd.xlane.f32.xlu0 %v1179
      %v1181 = vpop.xlane.xlu0 %1180
      %v1182 = vadd.f32 %v1076, %v1078
      %1183 = vadd.xlane.f32.xlu0 %v1182
      %v1184 = vpop.xlane.xlu0 %1183
      %v1185 = vadd.f32 %v1080, %v1082
      %1186 = vadd.xlane.f32.xlu0 %v1185
      %v1187 = vpop.xlane.xlu0 %1186
      %v1188 = vadd.f32 %v1084, %v1086
      %1189 = vadd.xlane.f32.xlu0 %v1188
      %v1190 = vpop.xlane.xlu0 %1189
      %v1191 = vadd.f32 %v1088, %v1090
      %1192 = vadd.xlane.f32.xlu0 %v1191
      %v1193 = vpop.xlane.xlu0 %1192
      %v1194 = vadd.f32 %v1092, %v1094
      %1195 = vadd.xlane.f32.xlu0 %v1194
      %v1196 = vpop.xlane.xlu0 %1195
      %v1197 = vadd.f32 %v1096, %v1098
      %1198 = vadd.xlane.f32.xlu0 %v1197
      %v1199 = vpop.xlane.xlu0 %1198
      %v1200 = vadd.f32 %v1100, %v1102
      %1201 = vadd.xlane.f32.xlu0 %v1200
      %v1202 = vpop.xlane.xlu0 %1201
      %v1203 = vadd.f32 %v1104, %v1106
      %1204 = vadd.xlane.f32.xlu0 %v1203
      %v1205 = vpop.xlane.xlu0 %1204
      %v1206 = vadd.f32 %v1108, %v1110
      %1207 = vadd.xlane.f32.xlu0 %v1206
      %v1208 = vpop.xlane.xlu0 %1207
      %v1209 = vadd.f32 %v1112, %v1114
      %1210 = vadd.xlane.f32.xlu0 %v1209
      %v1211 = vpop.xlane.xlu0 %1210
      %v1212 = vadd.f32 %v1116, %v1118
      %1213 = vadd.xlane.f32.xlu0 %v1212
      %v1214 = vpop.xlane.xlu0 %1213
      %v1215 = vrcp.pop %v1121
      %v1216 = vrcp.pop %v1124
      %v1217 = vrcp.pop %v1127
      %v1218 = vrcp.pop %v1130
      %v1219 = vrcp.pop %v1133
      %v1220 = vrcp.pop %v1136
      %v1221 = vrcp.pop %v1139
      %v1222 = vrcp.pop %v1142
      %v1223 = vrcp.pop %v1145
      %v1224 = vrcp.pop %v1148
      %v1225 = vrcp.pop %v1151
      %v1226 = vrcp.pop %v1154
      %v1227 = vrcp.pop %v1157
      %v1228 = vrcp.pop %v1160
      %v1229 = vrcp.pop %v1163
      %v1230 = vrcp.pop %v1166
      %v1231 = vrcp.pop %v1169
      %v1232 = vrcp.pop %v1172
      %v1233 = vrcp.pop %v1175
      %v1234 = vrcp.pop %v1178
      %v1235 = vrcp.pop %v1181
      %v1236 = vrcp.pop %v1184
      %v1237 = vrcp.pop %v1187
      %v1238 = vrcp.pop %v1190
      %v1239 = vrcp.pop %v1193
      %v1240 = vrcp.pop %v1196
      %v1241 = vrcp.pop %v1199
      %v1242 = vrcp.pop %v1202
      %v1243 = vrcp.pop %v1205
      %v1244 = vrcp.pop %v1208
      %v1245 = vrcp.pop %v1211
      %v1246 = vrcp.pop %v1214
      %v1247 = vmul.f32 %v992, %v1215
      %v1248 = vmul.f32 %v994, %v1215
      %v1249 = vmul.f32 %v996, %v1216
      %v1250 = vmul.f32 %v998, %v1216
      %v1251 = vmul.f32 %v1000, %v1217
      %v1252 = vmul.f32 %v1002, %v1217
      %v1253 = vmul.f32 %v1004, %v1218
      %v1254 = vmul.f32 %v1006, %v1218
      %v1255 = vmul.f32 %v1008, %v1219
      %v1256 = vmul.f32 %v1010, %v1219
      %v1257 = vmul.f32 %v1012, %v1220
      %v1258 = vmul.f32 %v1014, %v1220
      %v1259 = vmul.f32 %v1016, %v1221
      %v1260 = vmul.f32 %v1018, %v1221
      %v1261 = vmul.f32 %v1020, %v1222
      %v1262 = vmul.f32 %v1022, %v1222
      %v1263 = vmul.f32 %v1024, %v1223
      %v1264 = vmul.f32 %v1026, %v1223
      %v1265 = vmul.f32 %v1028, %v1224
      %v1266 = vmul.f32 %v1030, %v1224
      %v1267 = vmul.f32 %v1032, %v1225
      %v1268 = vmul.f32 %v1034, %v1225
      %v1269 = vmul.f32 %v1036, %v1226
      %v1270 = vmul.f32 %v1038, %v1226
      %v1271 = vmul.f32 %v1040, %v1227
      %v1272 = vmul.f32 %v1042, %v1227
      %v1273 = vmul.f32 %v1044, %v1228
      %v1274 = vmul.f32 %v1046, %v1228
      %v1275 = vmul.f32 %v1048, %v1229
      %v1276 = vmul.f32 %v1050, %v1229
      %v1277 = vmul.f32 %v1052, %v1230
      %v1278 = vmul.f32 %v1054, %v1230
      %v1279 = vmul.f32 %v1056, %v1231
      %v1280 = vmul.f32 %v1058, %v1231
      %v1281 = vmul.f32 %v1060, %v1232
      %v1282 = vmul.f32 %v1062, %v1232
      %v1283 = vmul.f32 %v1064, %v1233
      %v1284 = vmul.f32 %v1066, %v1233
      %v1285 = vmul.f32 %v1068, %v1234
      %v1286 = vmul.f32 %v1070, %v1234
      %v1287 = vmul.f32 %v1072, %v1235
      %v1288 = vmul.f32 %v1074, %v1235
      %v1289 = vmul.f32 %v1076, %v1236
      %v1290 = vmul.f32 %v1078, %v1236
      %v1291 = vmul.f32 %v1080, %v1237
      %v1292 = vmul.f32 %v1082, %v1237
      %v1293 = vmul.f32 %v1084, %v1238
      %v1294 = vmul.f32 %v1086, %v1238
      %v1295 = vmul.f32 %v1088, %v1239
      %v1296 = vmul.f32 %v1090, %v1239
      %v1297 = vmul.f32 %v1092, %v1240
      %v1298 = vmul.f32 %v1094, %v1240
      %v1299 = vmul.f32 %v1096, %v1241
      %v1300 = vmul.f32 %v1098, %v1241
      %v1301 = vmul.f32 %v1100, %v1242
      %v1302 = vmul.f32 %v1102, %v1242
      %v1303 = vmul.f32 %v1104, %v1243
      %v1304 = vmul.f32 %v1106, %v1243
      %v1305 = vmul.f32 %v1108, %v1244
      %v1306 = vmul.f32 %v1110, %v1244
      %v1307 = vmul.f32 %v1112, %v1245
      %v1308 = vmul.f32 %v1114, %v1245
      %v1309 = vmul.f32 %v1116, %v1246
      %v1310 = vmul.f32 %v1118, %v1246
      %v1311 = vpack.c.bf16 %v414, %v410
      %v1312 = vpack.c.bf16 %v416, %v412
      %v1313 = vpack.c.bf16 %v424, %v420
      %v1314 = vpack.c.bf16 %v426, %v422
      %v1315 = vpack.c.bf16 %v1249, %v1247
      %v1316 = vpack.c.bf16 %v1250, %v1248
      %v1317 = vpack.c.bf16 %v1253, %v1251
      %v1318 = vpack.c.bf16 %v1254, %v1252
      %v1319 = vpack.c.bf16 %v1257, %v1255
      %v1320 = vpack.c.bf16 %v1258, %v1256
      %v1321 = vpack.c.bf16 %v1261, %v1259
      %v1322 = vpack.c.bf16 %v1262, %v1260
      %v1323 = vpack.c.bf16 %v1265, %v1263
      %v1324 = vpack.c.bf16 %v1266, %v1264
      %v1325 = vpack.c.bf16 %v1269, %v1267
      %v1326 = vpack.c.bf16 %v1270, %v1268
      %v1327 = vpack.c.bf16 %v1273, %v1271
      %v1328 = vpack.c.bf16 %v1274, %v1272
      %v1329 = vpack.c.bf16 %v1277, %v1275
      %v1330 = vpack.c.bf16 %v1278, %v1276
      %v1331 = vpack.c.bf16 %v1281, %v1279
      %v1332 = vpack.c.bf16 %v1282, %v1280
      %v1333 = vpack.c.bf16 %v1285, %v1283
      %v1334 = vpack.c.bf16 %v1286, %v1284
      %v1335 = vpack.c.bf16 %v1289, %v1287
      %v1336 = vpack.c.bf16 %v1290, %v1288
      %v1337 = vpack.c.bf16 %v1293, %v1291
      %v1338 = vpack.c.bf16 %v1294, %v1292
      %v1339 = vpack.c.bf16 %v1297, %v1295
      %v1340 = vpack.c.bf16 %v1298, %v1296
      %v1341 = vpack.c.bf16 %v1301, %v1299
      %v1342 = vpack.c.bf16 %v1302, %v1300
      %v1343 = vpack.c.bf16 %v1305, %v1303
      %v1344 = vpack.c.bf16 %v1306, %v1304
      %v1345 = vpack.c.bf16 %v1309, %v1307
      %v1346 = vpack.c.bf16 %v1310, %v1308
      %1347 = vmatprep.subr.bf16.mxu0 %v1316
      %1348 = vmatpush1.bf16.xpose.msra.mxu0 %v1315
      %1349 = vmatprep.subr.bf16.mxu0 %v1318
      %1350 = vmatpush1.bf16.xpose.msra.mxu0 %v1317
      %1351 = vmatprep.subr.bf16.mxu0 %v1320
      %1352 = vmatpush1.bf16.xpose.msra.mxu0 %v1319
      %1353 = vmatprep.subr.bf16.mxu0 %v1322
      %1354 = vmatpush1.bf16.xpose.msra.mxu0 %v1321
      %1355 = vmatprep.subr.bf16.mxu0 %v1324
      %1356 = vmatpush1.bf16.xpose.msra.mxu0 %v1323
      %1357 = vmatprep.subr.bf16.mxu0 %v1326
      %1358 = vmatpush1.bf16.xpose.msra.mxu0 %v1325
      %1359 = vmatprep.subr.bf16.mxu0 %v1328
      %1360 = vmatpush1.bf16.xpose.msra.mxu0 %v1327
      %1361 = vmatprep.subr.bf16.mxu0 %v1330
      %1362 = vmatpush1.bf16.xpose.msra.mxu0 %v1329
      %1363 = vmatprep.subr.bf16.mxu0 %v1332
      %1364 = vmatpush1.bf16.xpose.msra.mxu0 %v1331
      %1365 = vmatprep.subr.bf16.mxu0 %v1334
      %1366 = vmatpush1.bf16.xpose.msra.mxu0 %v1333
      %1367 = vmatprep.subr.bf16.mxu0 %v1336
      %1368 = vmatpush1.bf16.xpose.msra.mxu0 %v1335
      %1369 = vmatprep.subr.bf16.mxu0 %v1338
      %1370 = vmatpush1.bf16.xpose.msra.mxu0 %v1337
      %1371 = vmatprep.subr.bf16.mxu0 %v1340
      %1372 = vmatpush1.bf16.xpose.msra.mxu0 %v1339
      %1373 = vmatprep.subr.bf16.mxu0 %v1342
      %1374 = vmatpush1.bf16.xpose.msra.mxu0 %v1341
      %1375 = vmatprep.subr.bf16.mxu0 %v1344
      %1376 = vmatpush1.bf16.xpose.msra.mxu0 %v1343
      %1377 = vmatprep.subr.bf16.mxu0 %v1346
      %1378 = vmatpush1.bf16.xpose.msra.mxu0 %v1345
      %1379 = vmatprep.mubr.bf16.mxu0 %v1312
      %1380 = vmatmul.mubr.bf16.gmra.mrb[0].mxu0 %v1311
      %v1381 = vpop.f32.mrb[0].mxu0
      %v1382 = vadd.f32 0.0, %v1381
      %v1383 = vpop.f32.mrb[0].mxu0
      %v1384 = vadd.f32 0.0, %v1383
      %v1385 = vpop.f32.mrb[0].mxu0
      %v1386 = vadd.f32 0.0, %v1385
      %v1387 = vpop.f32.mrb[0].mxu0
      %v1388 = vadd.f32 0.0, %v1387
      %1389 = vmatprep.mubr.bf16.mxu0 %v1314
      %1390 = vmatmul.mubr.bf16.gmra.mrb[0].mxu0 %v1313
      %v1391 = vpop.f32.mrb[0].mxu0
      %v1392 = vadd.f32 0.0, %v1391
      %v1393 = vpop.f32.mrb[0].mxu0
      %v1394 = vadd.f32 0.0, %v1393
      %v1395 = vpop.f32.mrb[0].mxu0
      %v1396 = vadd.f32 0.0, %v1395
      %v1397 = vpop.f32.mrb[0].mxu0
      %v1398 = vadd.f32 0.0, %v1397
      %1399 = vdwg.mxu0
      %s1400 = sld [smem:[#allocation4]]
      %v1401 = vstv %s1400
      %v1402 = vmul.f32 %v1382, %v1401
      %v1403 = vmul.f32 %v1384, %v1401
      %v1404 = vmul.f32 %v1386, %v1401
      %v1405 = vmul.f32 %v1388, %v1401
      %v1406 = vmul.f32 %v1392, %v1401
      %v1407 = vmul.f32 %v1394, %v1401
      %v1408 = vmul.f32 %v1396, %v1401
      %v1409 = vmul.f32 %v1398, %v1401
      %v1410 = vmax.f32 %v1402, 0.0
      %v1411 = vmax.f32 %v1403, 0.0
      %v1412 = vmax.f32 %v1404, 0.0
      %v1413 = vmax.f32 %v1405, 0.0
      %v1414 = vmax.f32 %v1406, 0.0
      %v1415 = vmax.f32 %v1407, 0.0
      %v1416 = vmax.f32 %v1408, 0.0
      %v1417 = vmax.f32 %v1409, 0.0
      %s1418 = smul.u32 %s20, 8
      %s1419 = smul.addr %s1418, 8
      %s1420 = scalar_lea.vmem %s8, %s1419
      %1421 = vst [vmem:[%s1420] sm:$0xff] %v1410
      %1422 = vst [vmem:[%s1420 + $0x8] sm:$0xff] %v1411
      %1423 = vst [vmem:[%s1420 + $0x10] sm:$0xff] %v1412
      %1424 = vst [vmem:[%s1420 + $0x18] sm:$0xff] %v1413
      %1425 = vst [vmem:[%s1420 + $0x20] sm:$0xff] %v1414
      %1426 = vst [vmem:[%s1420 + $0x28] sm:$0xff] %v1415
      %1427 = vst [vmem:[%s1420 + $0x30] sm:$0xff] %v1416
      %1428 = vst [vmem:[%s1420 + $0x38] sm:$0xff] %v1417
      %v1429 = vld [vmem:[#allocation2] sm:$0xff]
      %v1430 = vld [vmem:[#allocation2 + $0x8] sm:$0xff]
      %v1431 = vld [vmem:[#allocation2 + $0x10] sm:$0xff]
      %v1432 = vld [vmem:[#allocation2 + $0x18] sm:$0xff]
      %v1433 = vadd.f32 %v1410, %v1411
      %1434 = vadd.xlane.f32.xlu0 %v1433
      %v1435 = vpop.xlane.xlu0 %1434
      %v1436 = vadd.f32 %v1412, %v1413
      %1437 = vadd.xlane.f32.xlu0 %v1436
      %v1438 = vpop.xlane.xlu0 %1437
      %v1439 = vadd.f32 %v1414, %v1415
      %1440 = vadd.xlane.f32.xlu0 %v1439
      %v1441 = vpop.xlane.xlu0 %1440
      %v1442 = vadd.f32 %v1416, %v1417
      %1443 = vadd.xlane.f32.xlu0 %v1442
      %v1444 = vpop.xlane.xlu0 %1443
      %v1445 = vadd.f32 %v1429, %v1435
      %v1446 = vadd.f32 %v1430, %v1438
      %v1447 = vadd.f32 %v1431, %v1441
      %v1448 = vadd.f32 %v1432, %v1444
      %vm1449 = vcmask 7168
      %1450 = vst.msk [vmem:[#allocation2] sm:$0xff] %vm1449, %v1445
      %1451 = vst.msk [vmem:[#allocation2 + $0x8] sm:$0xff] %vm1449, %v1446
      %1452 = vst.msk [vmem:[#allocation2 + $0x10] sm:$0xff] %vm1449, %v1447
      %1453 = vst.msk [vmem:[#allocation2 + $0x18] sm:$0xff] %vm1449, %v1448
      %v1454 = vld [vmem:[#allocation3] sm:$0xff]
      %v1455 = vld [vmem:[#allocation3 + $0x8] sm:$0xff]
      %v1456 = vld [vmem:[#allocation3 + $0x10] sm:$0xff]
      %v1457 = vld [vmem:[#allocation3 + $0x18] sm:$0xff]
      %v1458 = vmul.f32 %v1410, %v1410
      %v1459 = vmul.f32 %v1411, %v1411
      %v1460 = vmul.f32 %v1412, %v1412
      %v1461 = vmul.f32 %v1413, %v1413
      %v1462 = vmul.f32 %v1414, %v1414
      %v1463 = vmul.f32 %v1415, %v1415
      %v1464 = vmul.f32 %v1416, %v1416
      %v1465 = vmul.f32 %v1417, %v1417
      %v1466 = vadd.f32 %v1458, %v1459
      %1467 = vadd.xlane.f32.xlu0 %v1466
      %v1468 = vpop.xlane.xlu0 %1467
      %v1469 = vadd.f32 %v1460, %v1461
      %1470 = vadd.xlane.f32.xlu0 %v1469
      %v1471 = vpop.xlane.xlu0 %1470
      %v1472 = vadd.f32 %v1462, %v1463
      %1473 = vadd.xlane.f32.xlu0 %v1472
      %v1474 = vpop.xlane.xlu0 %1473
      %v1475 = vadd.f32 %v1464, %v1465
      %1476 = vadd.xlane.f32.xlu0 %v1475
      %v1477 = vpop.xlane.xlu0 %1476
      %v1478 = vadd.f32 %v1454, %v1468
      %v1479 = vadd.f32 %v1455, %v1471
      %v1480 = vadd.f32 %v1456, %v1474
      %v1481 = vadd.f32 %v1457, %v1477
      %1482 = vst.msk [vmem:[#allocation3] sm:$0xff] %vm1449, %v1478
      %1483 = vst.msk [vmem:[#allocation3 + $0x8] sm:$0xff] %vm1449, %v1479
      %1484 = vst.msk [vmem:[#allocation3 + $0x10] sm:$0xff] %vm1449, %v1480
      %1485 = vst.msk [vmem:[#allocation3 + $0x18] sm:$0xff] %vm1449, %v1481
      %p1486 = scmp.eq.s32.totalorder %s20, 1
      // Predicated region
      $region57: #{spat_attn_forward.1} parent=51 // pred_check
        %p1487 = pneg %p1486
      $region58: #{spat_attn_forward.1} parent=51 // pred_check_branch
        %1489 = sbr.rel (%p1487) target = $region60
      $region59: #{spat_attn_forward.1} parent=51 // pred_region
        %v1490 = vld [vmem:[#allocation2] sm:$0xff]
        %v1491 = vld [vmem:[#allocation2 + $0x8] sm:$0xff]
        %v1492 = vld [vmem:[#allocation2 + $0x10] sm:$0xff]
        %v1493 = vld [vmem:[#allocation2 + $0x18] sm:$0xff]
        %v1494 = vmul.f32 %v1490, 0.001953125
        %v1495 = vmul.f32 %v1491, 0.001953125
        %v1496 = vmul.f32 %v1492, 0.001953125
        %v1497 = vmul.f32 %v1493, 0.001953125
        %v1498 = vld [vmem:[#allocation3] sm:$0xff]
        %v1499 = vld [vmem:[#allocation3 + $0x8] sm:$0xff]
        %v1500 = vld [vmem:[#allocation3 + $0x10] sm:$0xff]
        %v1501 = vld [vmem:[#allocation3 + $0x18] sm:$0xff]
        %v1502 = vmul.f32 %v1498, 0.001953125
        %v1503 = vmul.f32 %v1499, 0.001953125
        %v1504 = vmul.f32 %v1500, 0.001953125
        %v1505 = vmul.f32 %v1501, 0.001953125
        %v1506 = vmul.f32 %v1494, %v1494
        %v1507 = vmul.f32 %v1495, %v1495
        %v1508 = vmul.f32 %v1496, %v1496
        %v1509 = vmul.f32 %v1497, %v1497
        %v1510 = vsub.f32 %v1502, %v1506
        %v1511 = vsub.f32 %v1503, %v1507
        %v1512 = vsub.f32 %v1504, %v1508
        %v1513 = vsub.f32 %v1505, %v1509
        %v1514 = vmax.f32 %v1510, 0.0
        %v1515 = vmax.f32 %v1511, 0.0
        %v1516 = vmax.f32 %v1512, 0.0
        %v1517 = vmax.f32 %v1513, 0.0
        %v1518 = vld [vmem:[%s6] sm:$0xff]
        %v1519 = vld [vmem:[%s6 + $0x8] sm:$0xff]
        %v1520 = vld [vmem:[%s6 + $0x10] sm:$0xff]
        %v1521 = vld [vmem:[%s6 + $0x18] sm:$0xff]
        %v1522 = vadd.f32 %v1514, 1e-05
        %v1523 = vadd.f32 %v1515, 1e-05
        %v1524 = vadd.f32 %v1516, 1e-05
        %v1525 = vadd.f32 %v1517, 1e-05
        %v1526 = vrsqrt.pop %v1522
        %v1527 = vrsqrt.pop %v1523
        %v1528 = vrsqrt.pop %v1524
        %v1529 = vrsqrt.pop %v1525
        %v1530 = vmul.f32 %v1518, %v1526
        %v1531 = vmul.f32 %v1519, %v1527
        %v1532 = vmul.f32 %v1520, %v1528
        %v1533 = vmul.f32 %v1521, %v1529
        %v1534 = vld [vmem:[%s7] sm:$0xff]
        %v1535 = vld [vmem:[%s7 + $0x8] sm:$0xff]
        %v1536 = vld [vmem:[%s7 + $0x10] sm:$0xff]
        %v1537 = vld [vmem:[%s7 + $0x18] sm:$0xff]
        %v1538 = vmul.f32 %v1494, %v1530
        %v1539 = vmul.f32 %v1495, %v1531
        %v1540 = vmul.f32 %v1496, %v1532
        %v1541 = vmul.f32 %v1497, %v1533
        %v1542 = vsub.f32 %v1534, %v1538
        %v1543 = vsub.f32 %v1535, %v1539
        %v1544 = vsub.f32 %v1536, %v1540
        %v1545 = vsub.f32 %v1537, %v1541
        %v1546 = vld [vmem:[%s8] sm:$0xff]
        %v1547 = vld [vmem:[%s8 + $0x8] sm:$0xff]
        %v1548 = vld [vmem:[%s8 + $0x10] sm:$0xff]
        %v1549 = vld [vmem:[%s8 + $0x18] sm:$0xff]
        %v1550 = vld [vmem:[%s8 + $0x20] sm:$0xff]
        %v1551 = vld [vmem:[%s8 + $0x28] sm:$0xff]
        %v1552 = vld [vmem:[%s8 + $0x30] sm:$0xff]
        %v1553 = vld [vmem:[%s8 + $0x38] sm:$0xff]
        %v1554 = vld [vmem:[%s8 + $0x40] sm:$0xff]
        %v1555 = vld [vmem:[%s8 + $0x48] sm:$0xff]
        %v1556 = vld [vmem:[%s8 + $0x50] sm:$0xff]
        %v1557 = vld [vmem:[%s8 + $0x58] sm:$0xff]
        %v1558 = vld [vmem:[%s8 + $0x60] sm:$0xff]
        %v1559 = vld [vmem:[%s8 + $0x68] sm:$0xff]
        %v1560 = vld [vmem:[%s8 + $0x70] sm:$0xff]
        %v1561 = vld [vmem:[%s8 + $0x78] sm:$0xff]
        %1563 = vset.pattern.permute.xlu0 0
        %1564 = vperm.xlu0 %1563, %v1530
        %v1565 = vpop.permute.xlu0 %1564
        %1568 = vset.pattern.permute.xlu0 0
        %1569 = vperm.xlu0 %1568, %v1531
        %v1570 = vpop.permute.xlu0 %1569
        %1573 = vset.pattern.permute.xlu0 0
        %1574 = vperm.xlu0 %1573, %v1532
        %v1575 = vpop.permute.xlu0 %1574
        %1578 = vset.pattern.permute.xlu0 0
        %1579 = vperm.xlu0 %1578, %v1533
        %v1580 = vpop.permute.xlu0 %1579
        %v1582 = vmul.f32 %v1546, %v1565
        %v1583 = vmul.f32 %v1547, %v1565
        %v1584 = vmul.f32 %v1548, %v1570
        %v1585 = vmul.f32 %v1549, %v1570
        %v1586 = vmul.f32 %v1550, %v1575
        %v1587 = vmul.f32 %v1551, %v1575
        %v1588 = vmul.f32 %v1552, %v1580
        %v1589 = vmul.f32 %v1553, %v1580
        %v1590 = vmul.f32 %v1554, %v1565
        %v1591 = vmul.f32 %v1555, %v1565
        %v1592 = vmul.f32 %v1556, %v1570
        %v1593 = vmul.f32 %v1557, %v1570
        %v1594 = vmul.f32 %v1558, %v1575
        %v1595 = vmul.f32 %v1559, %v1575
        %v1596 = vmul.f32 %v1560, %v1580
        %v1597 = vmul.f32 %v1561, %v1580
        %1599 = vset.pattern.permute.xlu0 0
        %1600 = vperm.xlu0 %1599, %v1542
        %v1601 = vpop.permute.xlu0 %1600
        %1604 = vset.pattern.permute.xlu0 0
        %1605 = vperm.xlu0 %1604, %v1543
        %v1606 = vpop.permute.xlu0 %1605
        %1609 = vset.pattern.permute.xlu0 0
        %1610 = vperm.xlu0 %1609, %v1544
        %v1611 = vpop.permute.xlu0 %1610
        %1614 = vset.pattern.permute.xlu0 0
        %1615 = vperm.xlu0 %1614, %v1545
        %v1616 = vpop.permute.xlu0 %1615
        %v1618 = vadd.f32 %v1582, %v1601
        %v1619 = vadd.f32 %v1583, %v1601
        %v1620 = vadd.f32 %v1584, %v1606
        %v1621 = vadd.f32 %v1585, %v1606
        %v1622 = vadd.f32 %v1586, %v1611
        %v1623 = vadd.f32 %v1587, %v1611
        %v1624 = vadd.f32 %v1588, %v1616
        %v1625 = vadd.f32 %v1589, %v1616
        %v1626 = vadd.f32 %v1590, %v1601
        %v1627 = vadd.f32 %v1591, %v1601
        %v1628 = vadd.f32 %v1592, %v1606
        %v1629 = vadd.f32 %v1593, %v1606
        %v1630 = vadd.f32 %v1594, %v1611
        %v1631 = vadd.f32 %v1595, %v1611
        %v1632 = vadd.f32 %v1596, %v1616
        %v1633 = vadd.f32 %v1597, %v1616
        %1634 = vst [vmem:[%s8] sm:$0xff] %v1618
        %1635 = vst [vmem:[%s8 + $0x8] sm:$0xff] %v1619
        %1636 = vst [vmem:[%s8 + $0x10] sm:$0xff] %v1620
        %1637 = vst [vmem:[%s8 + $0x18] sm:$0xff] %v1621
        %1638 = vst [vmem:[%s8 + $0x20] sm:$0xff] %v1622
        %1639 = vst [vmem:[%s8 + $0x28] sm:$0xff] %v1623
        %1640 = vst [vmem:[%s8 + $0x30] sm:$0xff] %v1624
        %1641 = vst [vmem:[%s8 + $0x38] sm:$0xff] %v1625
        %1642 = vst [vmem:[%s8 + $0x40] sm:$0xff] %v1626
        %1643 = vst [vmem:[%s8 + $0x48] sm:$0xff] %v1627
        %1644 = vst [vmem:[%s8 + $0x50] sm:$0xff] %v1628
        %1645 = vst [vmem:[%s8 + $0x58] sm:$0xff] %v1629
        %1646 = vst [vmem:[%s8 + $0x60] sm:$0xff] %v1630
        %1647 = vst [vmem:[%s8 + $0x68] sm:$0xff] %v1631
        %1648 = vst [vmem:[%s8 + $0x70] sm:$0xff] %v1632
        %1649 = vst [vmem:[%s8 + $0x78] sm:$0xff] %v1633
      $region60: #{spat_attn_forward.1} parent=51 // pred_fallthru
        _
      // Predicated region
      $region61: #{spat_attn_forward.1} parent=51 // pred_check
        %p1650 = pneg %p206
      $region62: #{spat_attn_forward.1} parent=51 // pred_check_branch
        %1652 = sbr.rel (%p1650) target = $region64
      $region63: #{spat_attn_forward.1} parent=51 // pred_region
        _
      $region64: #{spat_attn_forward.1} parent=51 // pred_fallthru
        _
      // Predicated region
      $region65: #{spat_attn_forward.1} parent=51 // pred_check
        %p1653 = pneg %p206
      $region66: #{spat_attn_forward.1} parent=51 // pred_check_branch
        %1655 = sbr.rel (%p1653) target = $region68
      $region67: #{spat_attn_forward.1} parent=51 // pred_region
        _
      $region68: #{spat_attn_forward.1} parent=51 // pred_fallthru
        _
    $region52: #{spat_attn_forward.1} parent=5 // pred_fallthru
      _
    %p1656 = scmp.le.s32.totalorder 2, %s15
    // Predicated region
    $region69: #{spat_attn_forward.1} parent=5 // pred_check
      %p1657 = pneg %p1656
    $region70: #{spat_attn_forward.1} parent=5 // pred_check_branch
      %1659 = sbr.rel (%p1657) target = $region72
    $region71: #{spat_attn_forward.1} parent=5 // pred_region
      %s1660 = ssub.s32 %s15, 2
    $region72: #{spat_attn_forward.1} parent=5 // pred_fallthru
      _
  $region6: #{spat_attn_forward.1} parent=0 // loop_footer
    %s19 = sadd.s32 1, %s15
  $region7: #{spat_attn_forward.1} parent=0 // loop_footer_branch
    %14 = sbr.rel target = $region3
  $region8: #{spat_attn_forward.1} parent=0 // loop_exit
    _

</llo_original>
